<compile_context>
chip_gen: v5e
topology: v5e:2x2
jax: 0.10.0
libtpu: 0.0.40
codegen_flags: <defaults>
</compile_context>

<pallas_src>
import functools

import jax
import jax.numpy as jnp
from jax.experimental import pallas as pl
from jax.experimental.pallas import tpu as pltpu


# -------- packed parameter slab row layout (all static, per layer) --------
_ROW_BA1 = 0        # (1, HID)  attention-MLP hidden bias (zero padded to HID)
_ROW_WA2 = 1        # (1, HID)  attention-MLP output weight row (zero padded)
_ROW_BA2 = 2        # (1, 1)    attention-MLP output bias
_ROW_BE1 = 3        # (1, F)    edge-NN hidden bias
_ROW_BE2 = 4        # (1, F)    edge-NN output bias
_ROW_THETA = 5      # (1, H*F)  theta
_ROW_BIAS = 6       # (1, out)  output bias
_ROW_WE1 = 7        # (2F, F)   edge-NN hidden weight, then (F, F) We2, then (3F, HID) Wa1


def _round_up(v, m):
    return ((v + m - 1) // m) * m


# --------------------------- fused per-layer kernel ---------------------------
def _htn_layer_kernel(idx_ref, x_ref, wp_ref, slab_ref, o_ref,
                      proj_rows_ref, acc_ref, *, H, F, HID, Nn, E, concat):
    f32 = jnp.float32
    HF = H * F
    out_cols = HF if concat else F
    r_we1 = _ROW_WE1
    r_we2 = _ROW_WE1 + 2 * F
    r_wa1 = _ROW_WE1 + 3 * F

    # --- unpack the single parameter slab (static slices of one DMA'd block) ---
    ba1 = slab_ref[_ROW_BA1:_ROW_BA1 + 1, 0:HID]            # (1, HID)
    wa2 = slab_ref[_ROW_WA2:_ROW_WA2 + 1, 0:HID]            # (1, HID)
    ba2 = slab_ref[_ROW_BA2:_ROW_BA2 + 1, 0:1]              # (1, 1)
    be1 = slab_ref[_ROW_BE1:_ROW_BE1 + 1, 0:F]              # (1, F)
    be2 = slab_ref[_ROW_BE2:_ROW_BE2 + 1, 0:F]              # (1, F)
    theta = slab_ref[_ROW_THETA:_ROW_THETA + 1, 0:HF]       # (1, HF)
    bias = slab_ref[_ROW_BIAS:_ROW_BIAS + 1, 0:out_cols]    # (1, out_cols)
    we1 = slab_ref[r_we1:r_we1 + 2 * F, 0:F]                # (2F, F)
    we2 = slab_ref[r_we2:r_we2 + F, 0:F]                    # (F, F)
    wa1 = slab_ref[r_wa1:r_wa1 + 3 * F, 0:HID]              # (3F, HID), zero-padded cols

    # 1) linear projection (reference linear_proj has no bias): (Nn, Fin)@(Fin, HF)
    proj = jnp.dot(x_ref[...], wp_ref[...], preferred_element_type=f32)   # (Nn, HF)

    # Stash projected rows so triplet roles can be gathered with dynamic
    # leading-axis reads (index-driven gather, no O(E*Nn) one-hot masks).
    for n in range(Nn):
        proj_rows_ref[n] = proj[n:n + 1, :]

    # 2) gather the 3 triplet roles using the SMEM edge indices.
    g = []
    for k in range(3):
        rows = [proj_rows_ref[idx_ref[k, e]] for e in range(E)]
        g.append(jnp.concatenate(rows, axis=0))                           # (E, HF)

    def gh(k, h):                                                         # (E, F)
        return g[k][:, h * F:(h + 1) * F]

    # 3) attention MLP: heads stacked along sublanes (one weight push per role
    #    block instead of per head); score = VPU multiply + lane reduction.
    g_stack = [jnp.concatenate([gh(k, h) for h in range(H)], axis=0) for k in range(3)]
    pre = (jnp.dot(g_stack[0], wa1[0:F, :], preferred_element_type=f32)
           + jnp.dot(g_stack[1], wa1[F:2 * F, :], preferred_element_type=f32)
           + jnp.dot(g_stack[2], wa1[2 * F:3 * F, :], preferred_element_type=f32)
           + ba1)
    a1 = jnp.maximum(pre, 0.0)                                            # ReLU, (H*E, HID)
    s = jnp.sum(a1 * wa2, axis=-1, keepdims=True) + ba2                   # (H*E, 1)
    s = jnp.where(s >= 0.0, s, 0.2 * s)                                   # LeakyReLU(0.2)

    # 4) head softmax on one packed (E, H) array; reciprocal on the EUP slot.
    scores = jnp.concatenate([s[h * E:(h + 1) * E, :] for h in range(H)], axis=1)  # (E, H)
    mx = jnp.max(scores, axis=-1, keepdims=True)
    ex = jnp.exp(scores - mx)
    sm = ex * pl.reciprocal(jnp.sum(ex, axis=-1, keepdims=True), approx=True)      # (E, H)

    # 5) edge NN batched over (branch, head) along sublanes: We1/We2 pushed once.
    pairs = ((1, 2), (0, 2), (0, 1))                                      # neighbor roles
    nb_a = jnp.concatenate([gh(a, h) for (a, _) in pairs for h in range(H)], axis=0)
    nb_b = jnp.concatenate([gh(b, h) for (_, b) in pairs for h in range(H)], axis=0)
    e1 = (jnp.dot(nb_a, we1[0:F, :], preferred_element_type=f32)
          + jnp.dot(nb_b, we1[F:2 * F, :], preferred_element_type=f32) + be1)
    e1 = jnp.where(e1 >= 0.0, e1, 0.2 * e1)                               # LeakyReLU(0.2)
    e2 = jnp.dot(e1, we2, preferred_element_type=f32) + be2               # (3*H*E, F)

    inv_h = 1.0 / float(H)
    for i in range(3):
        # attention-weighted per-edge messages, heads packed along lanes: (E, HF)
        weighted = jnp.concatenate(
            [sm[:, h:h + 1] * e2[(i * H + h) * E:(i * H + h + 1) * E, :]
             for h in range(H)],
            axis=1)
        # index-driven scatter_add into a VMEM accumulator (no (Nn, E) mask matmul).
        acc_ref[...] = jnp.zeros_like(acc_ref)
        for e in range(E):
            dst = idx_ref[i, e]
            acc_ref[dst] = acc_ref[dst] + weighted[e:e + 1, :]
        agg = jnp.concatenate([acc_ref[n] for n in range(Nn)], axis=0)    # (Nn, HF)

        out = theta * proj + agg                                          # (Nn, HF)
        if concat:
            y = out + bias
            # sigmoid with EUP reciprocal; ONE wide (Nn, HF) store per branch
            o_ref[i * Nn:(i + 1) * Nn, :] = pl.reciprocal(1.0 + jnp.exp(-y), approx=True)
        else:
            # mean over heads + bias, no activation (last layer); one wide store
            acc2 = out[:, 0:F]
            for h in range(1, H):
                acc2 = acc2 + out[:, h * F:(h + 1) * F]
            o_ref[i * Nn:(i + 1) * Nn, :] = acc2 * inv_h + bias


# ----------------------------- layer wrapper ---------------------------------
def htn_layer_forward(p, x, edge_index):
    H, F, concat, HID = p["H"], p["F"], p["concat"], p["HID"]
    HF = H * F
    out_cols = HF if concat else F
    Nn, Fin = x.shape
    E = edge_index.shape[1]
    slab = p["slab"]
    R, W = slab.shape

    kernel = functools.partial(_htn_layer_kernel, H=H, F=F, HID=HID,
                               Nn=Nn, E=E, concat=concat)
    grid_spec = pltpu.PrefetchScalarGridSpec(
        num_scalar_prefetch=1,                       # edge indices -> SMEM
        grid=(1,),
        in_specs=[
            pl.BlockSpec((Nn, Fin), lambda i, idx: (0, 0)),      # x
            pl.BlockSpec((Fin, HF), lambda i, idx: (0, 0)),      # Wp
            pl.BlockSpec((R, W), lambda i, idx: (0, 0)),         # packed param slab
        ],
        out_specs=pl.BlockSpec((3 * Nn, out_cols), lambda i, idx: (0, 0)),
        scratch_shapes=[
            pltpu.VMEM((Nn, 1, HF), jnp.float32),    # projected rows (gather source)
            pltpu.VMEM((Nn, 1, HF), jnp.float32),    # scatter_add accumulator
        ],
    )
    return pl.pallas_call(
        kernel,
        out_shape=jax.ShapeDtypeStruct((3 * Nn, out_cols), jnp.float32),
        grid_spec=grid_spec,
        compiler_params=pltpu.CompilerParams(
            dimension_semantics=("arbitrary",),
            vmem_limit_bytes=32 * 1024 * 1024,
        ),
    )(edge_index, x, p["Wp"], slab)


# ----------------------------- HTN model -------------------------------------
def init_htn_params(key, num_of_layers, num_heads_per_layer, num_features_per_layer,
                    attention_mlp_hidden=64):
    heads = [1] + list(num_heads_per_layer)
    params = []
    for i in range(num_of_layers):
        f_in = num_features_per_layer[i] * heads[i]
        f_out = num_features_per_layer[i + 1]
        H = heads[i + 1]
        concat = i < num_of_layers - 1
        HF = H * f_out
        hid = attention_mlp_hidden
        HID = _round_up(hid, 128)                    # lane-dense padded hidden (exact math)
        out_cols = HF if concat else f_out
        W = _round_up(max(HID, HF, out_cols), 128)
        R = _round_up(_ROW_WE1 + 6 * f_out, 8)

        key, *ks = jax.random.split(key, 12)
        s = 0.2

        def rnd(k, shape):
            return s * jax.random.normal(k, shape, jnp.float32)

        Wp = rnd(ks[0], (f_in, HF))
        Wa1 = rnd(ks[1], (3 * f_out, hid))
        ba1 = rnd(ks[2], (hid,))
        Wa2 = rnd(ks[3], (hid,))
        ba2 = rnd(ks[4], (1,))
        We1 = rnd(ks[5], (2 * f_out, f_out))
        be1 = rnd(ks[6], (f_out,))
        We2 = rnd(ks[7], (f_out, f_out))
        be2 = rnd(ks[8], (f_out,))
        theta = rnd(ks[9], (HF,))
        bias = rnd(ks[10], (out_cols,))

        # single packed parameter slab -> one DMA per layer for all small params
        slab = jnp.zeros((R, W), jnp.float32)
        slab = slab.at[_ROW_BA1, :hid].set(ba1)
        slab = slab.at[_ROW_WA2, :hid].set(Wa2)
        slab = slab.at[_ROW_BA2, 0].set(ba2[0])
        slab = slab.at[_ROW_BE1, :f_out].set(be1)
        slab = slab.at[_ROW_BE2, :f_out].set(be2)
        slab = slab.at[_ROW_THETA, :HF].set(theta)
        slab = slab.at[_ROW_BIAS, :out_cols].set(bias)
        slab = slab.at[_ROW_WE1:_ROW_WE1 + 2 * f_out, :f_out].set(We1)
        slab = slab.at[_ROW_WE1 + 2 * f_out:_ROW_WE1 + 3 * f_out, :f_out].set(We2)
        slab = slab.at[_ROW_WE1 + 3 * f_out:_ROW_WE1 + 6 * f_out, :hid].set(Wa1)

        params.append(dict(Wp=Wp, slab=slab, H=H, F=f_out, HID=HID, concat=concat))
    return params


def htn_forward(params, node_features, edge_index):
    idx = edge_index.astype(jnp.int32)               # (3, E), scalar-prefetched each layer
    x = node_features.astype(jnp.float32)
    for p in params:
        x = htn_layer_forward(p, x, idx)
    return x


# --------------------------------- demo ---------------------------------------
if __name__ == "__main__":
    num_of_layers = 2
    num_heads_per_layer = [2, 2]
    num_features_per_layer = [16, 8, 8]
    N, E = 12, 8

    key = jax.random.PRNGKey(0)
    k1, k2, k3 = jax.random.split(key, 3)
    node_features = jax.random.normal(k1, (N, num_features_per_layer[0]), jnp.float32)
    edge_index = jax.random.randint(k2, (3, E), 0, N, dtype=jnp.int32)
    params = init_htn_params(k3, num_of_layers, num_heads_per_layer, num_features_per_layer)

    out = htn_forward(params, node_features, edge_index)
    out = jax.block_until_ready(out)

    # each layer triples the node count (torch.cat along dim=0 of the 3 branches)
    expected_shape = (N * 3 ** num_of_layers, num_features_per_layer[-1])
    assert out.shape == expected_shape, (out.shape, expected_shape)
    assert bool(jnp.all(jnp.isfinite(out)))
    print("KERNEL_OK")
</pallas_src>

<mosaic_0001>
module attributes {stable_mosaic.version = 11 : i64} {
  func.func @_htn_layer_kernel(%arg0: i32, %arg1: memref<3x8xi32, #tpu.memory_space<smem>>, %arg2: memref<12x16xf32, #tpu.memory_space<vmem>>, %arg3: memref<16x16xf32, #tpu.memory_space<vmem>>, %arg4: memref<56x128xf32, #tpu.memory_space<vmem>>, %arg5: memref<36x16xf32, #tpu.memory_space<vmem>>, %arg6: memref<12x1x16xf32, #tpu.memory_space<vmem>>, %arg7: memref<12x1x16xf32, #tpu.memory_space<vmem>>) attributes {dimension_semantics = [#tpu.dimension_semantics<arbitrary>], iteration_bounds = array<i64: 1>, scalar_prefetch = 1 : i64, scratch_operands = 2 : i64, tpu.core_type = #tpu.core_type<tc>, window_params = [{pipeline_mode = #tpu.pipeline_mode<synchronous>, transform_indices = @transform_0, window_bounds = array<i64: 12, 16>}, {pipeline_mode = #tpu.pipeline_mode<synchronous>, transform_indices = @transform_1, window_bounds = array<i64: 16, 16>}, {pipeline_mode = #tpu.pipeline_mode<synchronous>, transform_indices = @transform_2, window_bounds = array<i64: 56, 128>}, {pipeline_mode = #tpu.pipeline_mode<synchronous>, transform_indices = @transform_3, window_bounds = array<i64: 36, 16>}]} {
    %c0 = arith.constant 0 : index
    %c0_0 = arith.constant 0 : index
    %0 = vector.load %arg4[%c0, %c0_0] : memref<56x128xf32, #tpu.memory_space<vmem>>, vector<1x128xf32>
    %c1 = arith.constant 1 : index
    %c0_1 = arith.constant 0 : index
    %1 = vector.load %arg4[%c1, %c0_1] : memref<56x128xf32, #tpu.memory_space<vmem>>, vector<1x128xf32>
    %c2 = arith.constant 2 : index
    %c0_2 = arith.constant 0 : index
    %2 = vector.load %arg4[%c2, %c0_2] : memref<56x128xf32, #tpu.memory_space<vmem>>, vector<1x1xf32>
    %c3 = arith.constant 3 : index
    %c0_3 = arith.constant 0 : index
    %3 = vector.load %arg4[%c3, %c0_3] : memref<56x128xf32, #tpu.memory_space<vmem>>, vector<1x8xf32>
    %c4 = arith.constant 4 : index
    %c0_4 = arith.constant 0 : index
    %4 = vector.load %arg4[%c4, %c0_4] : memref<56x128xf32, #tpu.memory_space<vmem>>, vector<1x8xf32>
    %c5 = arith.constant 5 : index
    %c0_5 = arith.constant 0 : index
    %5 = vector.load %arg4[%c5, %c0_5] : memref<56x128xf32, #tpu.memory_space<vmem>>, vector<1x16xf32>
    %c6 = arith.constant 6 : index
    %c0_6 = arith.constant 0 : index
    %6 = vector.load %arg4[%c6, %c0_6] : memref<56x128xf32, #tpu.memory_space<vmem>>, vector<1x16xf32>
    %c7 = arith.constant 7 : index
    %c0_7 = arith.constant 0 : index
    %7 = vector.load %arg4[%c7, %c0_7] : memref<56x128xf32, #tpu.memory_space<vmem>>, vector<16x8xf32>
    %c23 = arith.constant 23 : index
    %c0_8 = arith.constant 0 : index
    %8 = vector.load %arg4[%c23, %c0_8] : memref<56x128xf32, #tpu.memory_space<vmem>>, vector<8x8xf32>
    %c31 = arith.constant 31 : index
    %c0_9 = arith.constant 0 : index
    %9 = vector.load %arg4[%c31, %c0_9] : memref<56x128xf32, #tpu.memory_space<vmem>>, vector<24x128xf32>
    %c0_10 = arith.constant 0 : index
    %c0_11 = arith.constant 0 : index
    %10 = vector.load %arg2[%c0_10, %c0_11] : memref<12x16xf32, #tpu.memory_space<vmem>>, vector<12x16xf32>
    %c0_12 = arith.constant 0 : index
    %c0_13 = arith.constant 0 : index
    %11 = vector.load %arg3[%c0_12, %c0_13] : memref<16x16xf32, #tpu.memory_space<vmem>>, vector<16x16xf32>
    %cst = arith.constant dense<0.000000e+00> : vector<12x16xf32>
    %12 = tpu.matmul %10, %11, %cst {dimension_numbers = #tpu.dot_dimension_numbers<[1], [0], [0], [1], [0, 0, 1, 1], [], []>} : vector<12x16xf32>, vector<16x16xf32>, vector<12x16xf32> -> vector<12x16xf32>
    %13 = vector.extract_strided_slice %12 {offsets = [0, 0], sizes = [1, 16], strides = [1, 1]} : vector<12x16xf32> to vector<1x16xf32>
    %c0_14 = arith.constant 0 : index
    %c0_15 = arith.constant 0 : index
    %c0_16 = arith.constant 0 : index
    %14 = vector.load %arg6[%c0_14, %c0_15, %c0_16] : memref<12x1x16xf32, #tpu.memory_space<vmem>>, vector<1x1x16xf32>
    %15 = vector.shape_cast %14 : vector<1x1x16xf32> to vector<1x16xf32>
    %16 = vector.shape_cast %13 : vector<1x16xf32> to vector<1x1x16xf32>
    tpu.vector_store %arg6[%c0_14, %c0_15, %c0_16], %16 {strides = array<i32>} : memref<12x1x16xf32, #tpu.memory_space<vmem>>, vector<1x1x16xf32>,
    %17 = vector.extract_strided_slice %12 {offsets = [1, 0], sizes = [1, 16], strides = [1, 1]} : vector<12x16xf32> to vector<1x16xf32>
    %c1_17 = arith.constant 1 : index
    %c0_18 = arith.constant 0 : index
    %c0_19 = arith.constant 0 : index
    %18 = vector.load %arg6[%c1_17, %c0_18, %c0_19] : memref<12x1x16xf32, #tpu.memory_space<vmem>>, vector<1x1x16xf32>
    %19 = vector.shape_cast %18 : vector<1x1x16xf32> to vector<1x16xf32>
    %20 = vector.shape_cast %17 : vector<1x16xf32> to vector<1x1x16xf32>
    tpu.vector_store %arg6[%c1_17, %c0_18, %c0_19], %20 {strides = array<i32>} : memref<12x1x16xf32, #tpu.memory_space<vmem>>, vector<1x1x16xf32>,
    %21 = vector.extract_strided_slice %12 {offsets = [2, 0], sizes = [1, 16], strides = [1, 1]} : vector<12x16xf32> to vector<1x16xf32>
    %c2_20 = arith.constant 2 : index
    %c0_21 = arith.constant 0 : index
    %c0_22 = arith.constant 0 : index
    %22 = vector.load %arg6[%c2_20, %c0_21, %c0_22] : memref<12x1x16xf32, #tpu.memory_space<vmem>>, vector<1x1x16xf32>
    %23 = vector.shape_cast %22 : vector<1x1x16xf32> to vector<1x16xf32>
    %24 = vector.shape_cast %21 : vector<1x16xf32> to vector<1x1x16xf32>
    tpu.vector_store %arg6[%c2_20, %c0_21, %c0_22], %24 {strides = array<i32>} : memref<12x1x16xf32, #tpu.memory_space<vmem>>, vector<1x1x16xf32>,
    %25 = vector.extract_strided_slice %12 {offsets = [3, 0], sizes = [1, 16], strides = [1, 1]} : vector<12x16xf32> to vector<1x16xf32>
    %c3_23 = arith.constant 3 : index
    %c0_24 = arith.constant 0 : index
    %c0_25 = arith.constant 0 : index
    %26 = vector.load %arg6[%c3_23, %c0_24, %c0_25] : memref<12x1x16xf32, #tpu.memory_space<vmem>>, vector<1x1x16xf32>
    %27 = vector.shape_cast %26 : vector<1x1x16xf32> to vector<1x16xf32>
    %28 = vector.shape_cast %25 : vector<1x16xf32> to vector<1x1x16xf32>
    tpu.vector_store %arg6[%c3_23, %c0_24, %c0_25], %28 {strides = array<i32>} : memref<12x1x16xf32, #tpu.memory_space<vmem>>, vector<1x1x16xf32>,
    %29 = vector.extract_strided_slice %12 {offsets = [4, 0], sizes = [1, 16], strides = [1, 1]} : vector<12x16xf32> to vector<1x16xf32>
    %c4_26 = arith.constant 4 : index
    %c0_27 = arith.constant 0 : index
    %c0_28 = arith.constant 0 : index
    %30 = vector.load %arg6[%c4_26, %c0_27, %c0_28] : memref<12x1x16xf32, #tpu.memory_space<vmem>>, vector<1x1x16xf32>
    %31 = vector.shape_cast %30 : vector<1x1x16xf32> to vector<1x16xf32>
    %32 = vector.shape_cast %29 : vector<1x16xf32> to vector<1x1x16xf32>
    tpu.vector_store %arg6[%c4_26, %c0_27, %c0_28], %32 {strides = array<i32>} : memref<12x1x16xf32, #tpu.memory_space<vmem>>, vector<1x1x16xf32>,
    %33 = vector.extract_strided_slice %12 {offsets = [5, 0], sizes = [1, 16], strides = [1, 1]} : vector<12x16xf32> to vector<1x16xf32>
    %c5_29 = arith.constant 5 : index
    %c0_30 = arith.constant 0 : index
    %c0_31 = arith.constant 0 : index
    %34 = vector.load %arg6[%c5_29, %c0_30, %c0_31] : memref<12x1x16xf32, #tpu.memory_space<vmem>>, vector<1x1x16xf32>
    %35 = vector.shape_cast %34 : vector<1x1x16xf32> to vector<1x16xf32>
    %36 = vector.shape_cast %33 : vector<1x16xf32> to vector<1x1x16xf32>
    tpu.vector_store %arg6[%c5_29, %c0_30, %c0_31], %36 {strides = array<i32>} : memref<12x1x16xf32, #tpu.memory_space<vmem>>, vector<1x1x16xf32>,
    %37 = vector.extract_strided_slice %12 {offsets = [6, 0], sizes = [1, 16], strides = [1, 1]} : vector<12x16xf32> to vector<1x16xf32>
    %c6_32 = arith.constant 6 : index
    %c0_33 = arith.constant 0 : index
    %c0_34 = arith.constant 0 : index
    %38 = vector.load %arg6[%c6_32, %c0_33, %c0_34] : memref<12x1x16xf32, #tpu.memory_space<vmem>>, vector<1x1x16xf32>
    %39 = vector.shape_cast %38 : vector<1x1x16xf32> to vector<1x16xf32>
    %40 = vector.shape_cast %37 : vector<1x16xf32> to vector<1x1x16xf32>
    tpu.vector_store %arg6[%c6_32, %c0_33, %c0_34], %40 {strides = array<i32>} : memref<12x1x16xf32, #tpu.memory_space<vmem>>, vector<1x1x16xf32>,
    %41 = vector.extract_strided_slice %12 {offsets = [7, 0], sizes = [1, 16], strides = [1, 1]} : vector<12x16xf32> to vector<1x16xf32>
    %c7_35 = arith.constant 7 : index
    %c0_36 = arith.constant 0 : index
    %c0_37 = arith.constant 0 : index
    %42 = vector.load %arg6[%c7_35, %c0_36, %c0_37] : memref<12x1x16xf32, #tpu.memory_space<vmem>>, vector<1x1x16xf32>
    %43 = vector.shape_cast %42 : vector<1x1x16xf32> to vector<1x16xf32>
    %44 = vector.shape_cast %41 : vector<1x16xf32> to vector<1x1x16xf32>
    tpu.vector_store %arg6[%c7_35, %c0_36, %c0_37], %44 {strides = array<i32>} : memref<12x1x16xf32, #tpu.memory_space<vmem>>, vector<1x1x16xf32>,
    %45 = vector.extract_strided_slice %12 {offsets = [8, 0], sizes = [1, 16], strides = [1, 1]} : vector<12x16xf32> to vector<1x16xf32>
    %c8 = arith.constant 8 : index
    %c0_38 = arith.constant 0 : index
    %c0_39 = arith.constant 0 : index
    %46 = vector.load %arg6[%c8, %c0_38, %c0_39] : memref<12x1x16xf32, #tpu.memory_space<vmem>>, vector<1x1x16xf32>
    %47 = vector.shape_cast %46 : vector<1x1x16xf32> to vector<1x16xf32>
    %48 = vector.shape_cast %45 : vector<1x16xf32> to vector<1x1x16xf32>
    tpu.vector_store %arg6[%c8, %c0_38, %c0_39], %48 {strides = array<i32>} : memref<12x1x16xf32, #tpu.memory_space<vmem>>, vector<1x1x16xf32>,
    %49 = vector.extract_strided_slice %12 {offsets = [9, 0], sizes = [1, 16], strides = [1, 1]} : vector<12x16xf32> to vector<1x16xf32>
    %c9 = arith.constant 9 : index
    %c0_40 = arith.constant 0 : index
    %c0_41 = arith.constant 0 : index
    %50 = vector.load %arg6[%c9, %c0_40, %c0_41] : memref<12x1x16xf32, #tpu.memory_space<vmem>>, vector<1x1x16xf32>
    %51 = vector.shape_cast %50 : vector<1x1x16xf32> to vector<1x16xf32>
    %52 = vector.shape_cast %49 : vector<1x16xf32> to vector<1x1x16xf32>
    tpu.vector_store %arg6[%c9, %c0_40, %c0_41], %52 {strides = array<i32>} : memref<12x1x16xf32, #tpu.memory_space<vmem>>, vector<1x1x16xf32>,
    %53 = vector.extract_strided_slice %12 {offsets = [10, 0], sizes = [1, 16], strides = [1, 1]} : vector<12x16xf32> to vector<1x16xf32>
    %c10 = arith.constant 10 : index
    %c0_42 = arith.constant 0 : index
    %c0_43 = arith.constant 0 : index
    %54 = vector.load %arg6[%c10, %c0_42, %c0_43] : memref<12x1x16xf32, #tpu.memory_space<vmem>>, vector<1x1x16xf32>
    %55 = vector.shape_cast %54 : vector<1x1x16xf32> to vector<1x16xf32>
    %56 = vector.shape_cast %53 : vector<1x16xf32> to vector<1x1x16xf32>
    tpu.vector_store %arg6[%c10, %c0_42, %c0_43], %56 {strides = array<i32>} : memref<12x1x16xf32, #tpu.memory_space<vmem>>, vector<1x1x16xf32>,
    %57 = vector.extract_strided_slice %12 {offsets = [11, 0], sizes = [1, 16], strides = [1, 1]} : vector<12x16xf32> to vector<1x16xf32>
    %c11 = arith.constant 11 : index
    %c0_44 = arith.constant 0 : index
    %c0_45 = arith.constant 0 : index
    %58 = vector.load %arg6[%c11, %c0_44, %c0_45] : memref<12x1x16xf32, #tpu.memory_space<vmem>>, vector<1x1x16xf32>
    %59 = vector.shape_cast %58 : vector<1x1x16xf32> to vector<1x16xf32>
    %60 = vector.shape_cast %57 : vector<1x16xf32> to vector<1x1x16xf32>
    tpu.vector_store %arg6[%c11, %c0_44, %c0_45], %60 {strides = array<i32>} : memref<12x1x16xf32, #tpu.memory_space<vmem>>, vector<1x1x16xf32>,
    %c0_46 = arith.constant 0 : index
    %c0_47 = arith.constant 0 : index
    %61 = memref.load %arg1[%c0_46, %c0_47] : memref<3x8xi32, #tpu.memory_space<smem>>
    %62 = arith.index_cast %61 : i32 to index
    %c0_48 = arith.constant 0 : index
    %c0_49 = arith.constant 0 : index
    %63 = vector.load %arg6[%62, %c0_48, %c0_49] : memref<12x1x16xf32, #tpu.memory_space<vmem>>, vector<1x1x16xf32>
    %64 = vector.shape_cast %63 : vector<1x1x16xf32> to vector<1x16xf32>
    %c0_50 = arith.constant 0 : index
    %c1_51 = arith.constant 1 : index
    %65 = memref.load %arg1[%c0_50, %c1_51] : memref<3x8xi32, #tpu.memory_space<smem>>
    %66 = arith.index_cast %65 : i32 to index
    %c0_52 = arith.constant 0 : index
    %c0_53 = arith.constant 0 : index
    %67 = vector.load %arg6[%66, %c0_52, %c0_53] : memref<12x1x16xf32, #tpu.memory_space<vmem>>, vector<1x1x16xf32>
    %68 = vector.shape_cast %67 : vector<1x1x16xf32> to vector<1x16xf32>
    %c0_54 = arith.constant 0 : index
    %c2_55 = arith.constant 2 : index
    %69 = memref.load %arg1[%c0_54, %c2_55] : memref<3x8xi32, #tpu.memory_space<smem>>
    %70 = arith.index_cast %69 : i32 to index
    %c0_56 = arith.constant 0 : index
    %c0_57 = arith.constant 0 : index
    %71 = vector.load %arg6[%70, %c0_56, %c0_57] : memref<12x1x16xf32, #tpu.memory_space<vmem>>, vector<1x1x16xf32>
    %72 = vector.shape_cast %71 : vector<1x1x16xf32> to vector<1x16xf32>
    %c0_58 = arith.constant 0 : index
    %c3_59 = arith.constant 3 : index
    %73 = memref.load %arg1[%c0_58, %c3_59] : memref<3x8xi32, #tpu.memory_space<smem>>
    %74 = arith.index_cast %73 : i32 to index
    %c0_60 = arith.constant 0 : index
    %c0_61 = arith.constant 0 : index
    %75 = vector.load %arg6[%74, %c0_60, %c0_61] : memref<12x1x16xf32, #tpu.memory_space<vmem>>, vector<1x1x16xf32>
    %76 = vector.shape_cast %75 : vector<1x1x16xf32> to vector<1x16xf32>
    %c0_62 = arith.constant 0 : index
    %c4_63 = arith.constant 4 : index
    %77 = memref.load %arg1[%c0_62, %c4_63] : memref<3x8xi32, #tpu.memory_space<smem>>
    %78 = arith.index_cast %77 : i32 to index
    %c0_64 = arith.constant 0 : index
    %c0_65 = arith.constant 0 : index
    %79 = vector.load %arg6[%78, %c0_64, %c0_65] : memref<12x1x16xf32, #tpu.memory_space<vmem>>, vector<1x1x16xf32>
    %80 = vector.shape_cast %79 : vector<1x1x16xf32> to vector<1x16xf32>
    %c0_66 = arith.constant 0 : index
    %c5_67 = arith.constant 5 : index
    %81 = memref.load %arg1[%c0_66, %c5_67] : memref<3x8xi32, #tpu.memory_space<smem>>
    %82 = arith.index_cast %81 : i32 to index
    %c0_68 = arith.constant 0 : index
    %c0_69 = arith.constant 0 : index
    %83 = vector.load %arg6[%82, %c0_68, %c0_69] : memref<12x1x16xf32, #tpu.memory_space<vmem>>, vector<1x1x16xf32>
    %84 = vector.shape_cast %83 : vector<1x1x16xf32> to vector<1x16xf32>
    %c0_70 = arith.constant 0 : index
    %c6_71 = arith.constant 6 : index
    %85 = memref.load %arg1[%c0_70, %c6_71] : memref<3x8xi32, #tpu.memory_space<smem>>
    %86 = arith.index_cast %85 : i32 to index
    %c0_72 = arith.constant 0 : index
    %c0_73 = arith.constant 0 : index
    %87 = vector.load %arg6[%86, %c0_72, %c0_73] : memref<12x1x16xf32, #tpu.memory_space<vmem>>, vector<1x1x16xf32>
    %88 = vector.shape_cast %87 : vector<1x1x16xf32> to vector<1x16xf32>
    %c0_74 = arith.constant 0 : index
    %c7_75 = arith.constant 7 : index
    %89 = memref.load %arg1[%c0_74, %c7_75] : memref<3x8xi32, #tpu.memory_space<smem>>
    %90 = arith.index_cast %89 : i32 to index
    %c0_76 = arith.constant 0 : index
    %c0_77 = arith.constant 0 : index
    %91 = vector.load %arg6[%90, %c0_76, %c0_77] : memref<12x1x16xf32, #tpu.memory_space<vmem>>, vector<1x1x16xf32>
    %92 = vector.shape_cast %91 : vector<1x1x16xf32> to vector<1x16xf32>
    %93 = tpu.concatenate %64, %68, %72, %76, %80, %84, %88, %92 in 0 : vector<1x16xf32>, vector<1x16xf32>, vector<1x16xf32>, vector<1x16xf32>, vector<1x16xf32>, vector<1x16xf32>, vector<1x16xf32>, vector<1x16xf32> -> vector<8x16xf32>
    %c1_78 = arith.constant 1 : index
    %c0_79 = arith.constant 0 : index
    %94 = memref.load %arg1[%c1_78, %c0_79] : memref<3x8xi32, #tpu.memory_space<smem>>
    %95 = arith.index_cast %94 : i32 to index
    %c0_80 = arith.constant 0 : index
    %c0_81 = arith.constant 0 : index
    %96 = vector.load %arg6[%95, %c0_80, %c0_81] : memref<12x1x16xf32, #tpu.memory_space<vmem>>, vector<1x1x16xf32>
    %97 = vector.shape_cast %96 : vector<1x1x16xf32> to vector<1x16xf32>
    %c1_82 = arith.constant 1 : index
    %c1_83 = arith.constant 1 : index
    %98 = memref.load %arg1[%c1_82, %c1_83] : memref<3x8xi32, #tpu.memory_space<smem>>
    %99 = arith.index_cast %98 : i32 to index
    %c0_84 = arith.constant 0 : index
    %c0_85 = arith.constant 0 : index
    %100 = vector.load %arg6[%99, %c0_84, %c0_85] : memref<12x1x16xf32, #tpu.memory_space<vmem>>, vector<1x1x16xf32>
    %101 = vector.shape_cast %100 : vector<1x1x16xf32> to vector<1x16xf32>
    %c1_86 = arith.constant 1 : index
    %c2_87 = arith.constant 2 : index
    %102 = memref.load %arg1[%c1_86, %c2_87] : memref<3x8xi32, #tpu.memory_space<smem>>
    %103 = arith.index_cast %102 : i32 to index
    %c0_88 = arith.constant 0 : index
    %c0_89 = arith.constant 0 : index
    %104 = vector.load %arg6[%103, %c0_88, %c0_89] : memref<12x1x16xf32, #tpu.memory_space<vmem>>, vector<1x1x16xf32>
    %105 = vector.shape_cast %104 : vector<1x1x16xf32> to vector<1x16xf32>
    %c1_90 = arith.constant 1 : index
    %c3_91 = arith.constant 3 : index
    %106 = memref.load %arg1[%c1_90, %c3_91] : memref<3x8xi32, #tpu.memory_space<smem>>
    %107 = arith.index_cast %106 : i32 to index
    %c0_92 = arith.constant 0 : index
    %c0_93 = arith.constant 0 : index
    %108 = vector.load %arg6[%107, %c0_92, %c0_93] : memref<12x1x16xf32, #tpu.memory_space<vmem>>, vector<1x1x16xf32>
    %109 = vector.shape_cast %108 : vector<1x1x16xf32> to vector<1x16xf32>
    %c1_94 = arith.constant 1 : index
    %c4_95 = arith.constant 4 : index
    %110 = memref.load %arg1[%c1_94, %c4_95] : memref<3x8xi32, #tpu.memory_space<smem>>
    %111 = arith.index_cast %110 : i32 to index
    %c0_96 = arith.constant 0 : index
    %c0_97 = arith.constant 0 : index
    %112 = vector.load %arg6[%111, %c0_96, %c0_97] : memref<12x1x16xf32, #tpu.memory_space<vmem>>, vector<1x1x16xf32>
    %113 = vector.shape_cast %112 : vector<1x1x16xf32> to vector<1x16xf32>
    %c1_98 = arith.constant 1 : index
    %c5_99 = arith.constant 5 : index
    %114 = memref.load %arg1[%c1_98, %c5_99] : memref<3x8xi32, #tpu.memory_space<smem>>
    %115 = arith.index_cast %114 : i32 to index
    %c0_100 = arith.constant 0 : index
    %c0_101 = arith.constant 0 : index
    %116 = vector.load %arg6[%115, %c0_100, %c0_101] : memref<12x1x16xf32, #tpu.memory_space<vmem>>, vector<1x1x16xf32>
    %117 = vector.shape_cast %116 : vector<1x1x16xf32> to vector<1x16xf32>
    %c1_102 = arith.constant 1 : index
    %c6_103 = arith.constant 6 : index
    %118 = memref.load %arg1[%c1_102, %c6_103] : memref<3x8xi32, #tpu.memory_space<smem>>
    %119 = arith.index_cast %118 : i32 to index
    %c0_104 = arith.constant 0 : index
    %c0_105 = arith.constant 0 : index
    %120 = vector.load %arg6[%119, %c0_104, %c0_105] : memref<12x1x16xf32, #tpu.memory_space<vmem>>, vector<1x1x16xf32>
    %121 = vector.shape_cast %120 : vector<1x1x16xf32> to vector<1x16xf32>
    %c1_106 = arith.constant 1 : index
    %c7_107 = arith.constant 7 : index
    %122 = memref.load %arg1[%c1_106, %c7_107] : memref<3x8xi32, #tpu.memory_space<smem>>
    %123 = arith.index_cast %122 : i32 to index
    %c0_108 = arith.constant 0 : index
    %c0_109 = arith.constant 0 : index
    %124 = vector.load %arg6[%123, %c0_108, %c0_109] : memref<12x1x16xf32, #tpu.memory_space<vmem>>, vector<1x1x16xf32>
    %125 = vector.shape_cast %124 : vector<1x1x16xf32> to vector<1x16xf32>
    %126 = tpu.concatenate %97, %101, %105, %109, %113, %117, %121, %125 in 0 : vector<1x16xf32>, vector<1x16xf32>, vector<1x16xf32>, vector<1x16xf32>, vector<1x16xf32>, vector<1x16xf32>, vector<1x16xf32>, vector<1x16xf32> -> vector<8x16xf32>
    %c2_110 = arith.constant 2 : index
    %c0_111 = arith.constant 0 : index
    %127 = memref.load %arg1[%c2_110, %c0_111] : memref<3x8xi32, #tpu.memory_space<smem>>
    %128 = arith.index_cast %127 : i32 to index
    %c0_112 = arith.constant 0 : index
    %c0_113 = arith.constant 0 : index
    %129 = vector.load %arg6[%128, %c0_112, %c0_113] : memref<12x1x16xf32, #tpu.memory_space<vmem>>, vector<1x1x16xf32>
    %130 = vector.shape_cast %129 : vector<1x1x16xf32> to vector<1x16xf32>
    %c2_114 = arith.constant 2 : index
    %c1_115 = arith.constant 1 : index
    %131 = memref.load %arg1[%c2_114, %c1_115] : memref<3x8xi32, #tpu.memory_space<smem>>
    %132 = arith.index_cast %131 : i32 to index
    %c0_116 = arith.constant 0 : index
    %c0_117 = arith.constant 0 : index
    %133 = vector.load %arg6[%132, %c0_116, %c0_117] : memref<12x1x16xf32, #tpu.memory_space<vmem>>, vector<1x1x16xf32>
    %134 = vector.shape_cast %133 : vector<1x1x16xf32> to vector<1x16xf32>
    %c2_118 = arith.constant 2 : index
    %c2_119 = arith.constant 2 : index
    %135 = memref.load %arg1[%c2_118, %c2_119] : memref<3x8xi32, #tpu.memory_space<smem>>
    %136 = arith.index_cast %135 : i32 to index
    %c0_120 = arith.constant 0 : index
    %c0_121 = arith.constant 0 : index
    %137 = vector.load %arg6[%136, %c0_120, %c0_121] : memref<12x1x16xf32, #tpu.memory_space<vmem>>, vector<1x1x16xf32>
    %138 = vector.shape_cast %137 : vector<1x1x16xf32> to vector<1x16xf32>
    %c2_122 = arith.constant 2 : index
    %c3_123 = arith.constant 3 : index
    %139 = memref.load %arg1[%c2_122, %c3_123] : memref<3x8xi32, #tpu.memory_space<smem>>
    %140 = arith.index_cast %139 : i32 to index
    %c0_124 = arith.constant 0 : index
    %c0_125 = arith.constant 0 : index
    %141 = vector.load %arg6[%140, %c0_124, %c0_125] : memref<12x1x16xf32, #tpu.memory_space<vmem>>, vector<1x1x16xf32>
    %142 = vector.shape_cast %141 : vector<1x1x16xf32> to vector<1x16xf32>
    %c2_126 = arith.constant 2 : index
    %c4_127 = arith.constant 4 : index
    %143 = memref.load %arg1[%c2_126, %c4_127] : memref<3x8xi32, #tpu.memory_space<smem>>
    %144 = arith.index_cast %143 : i32 to index
    %c0_128 = arith.constant 0 : index
    %c0_129 = arith.constant 0 : index
    %145 = vector.load %arg6[%144, %c0_128, %c0_129] : memref<12x1x16xf32, #tpu.memory_space<vmem>>, vector<1x1x16xf32>
    %146 = vector.shape_cast %145 : vector<1x1x16xf32> to vector<1x16xf32>
    %c2_130 = arith.constant 2 : index
    %c5_131 = arith.constant 5 : index
    %147 = memref.load %arg1[%c2_130, %c5_131] : memref<3x8xi32, #tpu.memory_space<smem>>
    %148 = arith.index_cast %147 : i32 to index
    %c0_132 = arith.constant 0 : index
    %c0_133 = arith.constant 0 : index
    %149 = vector.load %arg6[%148, %c0_132, %c0_133] : memref<12x1x16xf32, #tpu.memory_space<vmem>>, vector<1x1x16xf32>
    %150 = vector.shape_cast %149 : vector<1x1x16xf32> to vector<1x16xf32>
    %c2_134 = arith.constant 2 : index
    %c6_135 = arith.constant 6 : index
    %151 = memref.load %arg1[%c2_134, %c6_135] : memref<3x8xi32, #tpu.memory_space<smem>>
    %152 = arith.index_cast %151 : i32 to index
    %c0_136 = arith.constant 0 : index
    %c0_137 = arith.constant 0 : index
    %153 = vector.load %arg6[%152, %c0_136, %c0_137] : memref<12x1x16xf32, #tpu.memory_space<vmem>>, vector<1x1x16xf32>
    %154 = vector.shape_cast %153 : vector<1x1x16xf32> to vector<1x16xf32>
    %c2_138 = arith.constant 2 : index
    %c7_139 = arith.constant 7 : index
    %155 = memref.load %arg1[%c2_138, %c7_139] : memref<3x8xi32, #tpu.memory_space<smem>>
    %156 = arith.index_cast %155 : i32 to index
    %c0_140 = arith.constant 0 : index
    %c0_141 = arith.constant 0 : index
    %157 = vector.load %arg6[%156, %c0_140, %c0_141] : memref<12x1x16xf32, #tpu.memory_space<vmem>>, vector<1x1x16xf32>
    %158 = vector.shape_cast %157 : vector<1x1x16xf32> to vector<1x16xf32>
    %159 = tpu.concatenate %130, %134, %138, %142, %146, %150, %154, %158 in 0 : vector<1x16xf32>, vector<1x16xf32>, vector<1x16xf32>, vector<1x16xf32>, vector<1x16xf32>, vector<1x16xf32>, vector<1x16xf32>, vector<1x16xf32> -> vector<8x16xf32>
    %160 = vector.extract_strided_slice %93 {offsets = [0, 0], sizes = [8, 8], strides = [1, 1]} : vector<8x16xf32> to vector<8x8xf32>
    %161 = vector.extract_strided_slice %93 {offsets = [0, 8], sizes = [8, 8], strides = [1, 1]} : vector<8x16xf32> to vector<8x8xf32>
    %162 = tpu.concatenate %160, %161 in 0 : vector<8x8xf32>, vector<8x8xf32> -> vector<16x8xf32>
    %163 = vector.extract_strided_slice %126 {offsets = [0, 0], sizes = [8, 8], strides = [1, 1]} : vector<8x16xf32> to vector<8x8xf32>
    %164 = vector.extract_strided_slice %126 {offsets = [0, 8], sizes = [8, 8], strides = [1, 1]} : vector<8x16xf32> to vector<8x8xf32>
    %165 = tpu.concatenate %163, %164 in 0 : vector<8x8xf32>, vector<8x8xf32> -> vector<16x8xf32>
    %166 = vector.extract_strided_slice %159 {offsets = [0, 0], sizes = [8, 8], strides = [1, 1]} : vector<8x16xf32> to vector<8x8xf32>
    %167 = vector.extract_strided_slice %159 {offsets = [0, 8], sizes = [8, 8], strides = [1, 1]} : vector<8x16xf32> to vector<8x8xf32>
    %168 = tpu.concatenate %166, %167 in 0 : vector<8x8xf32>, vector<8x8xf32> -> vector<16x8xf32>
    %169 = vector.extract_strided_slice %9 {offsets = [0, 0], sizes = [8, 128], strides = [1, 1]} : vector<24x128xf32> to vector<8x128xf32>
    %cst_142 = arith.constant dense<0.000000e+00> : vector<16x128xf32>
    %170 = tpu.matmul %162, %169, %cst_142 {dimension_numbers = #tpu.dot_dimension_numbers<[1], [0], [0], [1], [0, 0, 1, 1], [], []>} : vector<16x8xf32>, vector<8x128xf32>, vector<16x128xf32> -> vector<16x128xf32>
    %171 = vector.extract_strided_slice %9 {offsets = [8, 0], sizes = [8, 128], strides = [1, 1]} : vector<24x128xf32> to vector<8x128xf32>
    %cst_143 = arith.constant dense<0.000000e+00> : vector<16x128xf32>
    %172 = tpu.matmul %165, %171, %cst_143 {dimension_numbers = #tpu.dot_dimension_numbers<[1], [0], [0], [1], [0, 0, 1, 1], [], []>} : vector<16x8xf32>, vector<8x128xf32>, vector<16x128xf32> -> vector<16x128xf32>
    %173 = arith.addf %170, %172 : vector<16x128xf32>
    %174 = vector.extract_strided_slice %9 {offsets = [16, 0], sizes = [8, 128], strides = [1, 1]} : vector<24x128xf32> to vector<8x128xf32>
    %cst_144 = arith.constant dense<0.000000e+00> : vector<16x128xf32>
    %175 = tpu.matmul %168, %174, %cst_144 {dimension_numbers = #tpu.dot_dimension_numbers<[1], [0], [0], [1], [0, 0, 1, 1], [], []>} : vector<16x8xf32>, vector<8x128xf32>, vector<16x128xf32> -> vector<16x128xf32>
    %176 = arith.addf %173, %175 : vector<16x128xf32>
    %177 = vector.broadcast %0 : vector<1x128xf32> to vector<16x128xf32>
    %178 = arith.addf %176, %177 : vector<16x128xf32>
    %cst_145 = arith.constant 0.000000e+00 : f32
    %179 = vector.broadcast %cst_145 : f32 to vector<16x128xf32>
    %180 = arith.maximumf %178, %179 : vector<16x128xf32>
    %181 = vector.broadcast %1 : vector<1x128xf32> to vector<16x128xf32>
    %182 = arith.mulf %180, %181 : vector<16x128xf32>
    %cst_146 = arith.constant dense<0.000000e+00> : vector<16xf32>
    %183 = vector.multi_reduction <add>, %182, %cst_146 [1] : vector<16x128xf32> to vector<16xf32>
    %184 = vector.shape_cast %183 : vector<16xf32> to vector<16x1xf32>
    %185 = vector.broadcast %2 : vector<1x1xf32> to vector<16x1xf32>
    %186 = arith.addf %184, %185 : vector<16x1xf32>
    %cst_147 = arith.constant 0.000000e+00 : f32
    %187 = vector.broadcast %cst_147 : f32 to vector<16x1xf32>
    %188 = arith.cmpf oge, %186, %187 : vector<16x1xf32>
    %cst_148 = arith.constant 2.000000e-01 : f32
    %189 = vector.broadcast %cst_148 : f32 to vector<16x1xf32>
    %190 = arith.mulf %189, %186 : vector<16x1xf32>
    %191 = arith.select %188, %186, %190 : vector<16x1xi1>, vector<16x1xf32>
    %192 = vector.extract_strided_slice %191 {offsets = [0, 0], sizes = [8, 1], strides = [1, 1]} : vector<16x1xf32> to vector<8x1xf32>
    %193 = vector.extract_strided_slice %191 {offsets = [8, 0], sizes = [8, 1], strides = [1, 1]} : vector<16x1xf32> to vector<8x1xf32>
    %194 = tpu.concatenate %192, %193 in 1 : vector<8x1xf32>, vector<8x1xf32> -> vector<8x2xf32>
    %cst_149 = arith.constant dense<0xFF800000> : vector<8xf32>
    %195 = vector.multi_reduction <maximumf>, %194, %cst_149 [1] : vector<8x2xf32> to vector<8xf32>
    %196 = vector.shape_cast %195 : vector<8xf32> to vector<8x1xf32>
    %197 = vector.broadcast %196 : vector<8x1xf32> to vector<8x2xf32>
    %198 = arith.subf %194, %197 : vector<8x2xf32>
    %199 = math.exp %198 : vector<8x2xf32>
    %cst_150 = arith.constant dense<0.000000e+00> : vector<8xf32>
    %200 = vector.multi_reduction <add>, %199, %cst_150 [1] : vector<8x2xf32> to vector<8xf32>
    %201 = vector.shape_cast %200 : vector<8xf32> to vector<8x1xf32>
    %202 = tpu.reciprocal %201 {approx = true} : vector<8x1xf32> -> vector<8x1xf32>
    %203 = vector.broadcast %202 : vector<8x1xf32> to vector<8x2xf32>
    %204 = arith.mulf %199, %203 : vector<8x2xf32>
    %205 = vector.extract_strided_slice %126 {offsets = [0, 0], sizes = [8, 8], strides = [1, 1]} : vector<8x16xf32> to vector<8x8xf32>
    %206 = vector.extract_strided_slice %126 {offsets = [0, 8], sizes = [8, 8], strides = [1, 1]} : vector<8x16xf32> to vector<8x8xf32>
    %207 = vector.extract_strided_slice %93 {offsets = [0, 0], sizes = [8, 8], strides = [1, 1]} : vector<8x16xf32> to vector<8x8xf32>
    %208 = vector.extract_strided_slice %93 {offsets = [0, 8], sizes = [8, 8], strides = [1, 1]} : vector<8x16xf32> to vector<8x8xf32>
    %209 = vector.extract_strided_slice %93 {offsets = [0, 0], sizes = [8, 8], strides = [1, 1]} : vector<8x16xf32> to vector<8x8xf32>
    %210 = vector.extract_strided_slice %93 {offsets = [0, 8], sizes = [8, 8], strides = [1, 1]} : vector<8x16xf32> to vector<8x8xf32>
    %211 = tpu.concatenate %205, %206, %207, %208, %209, %210 in 0 : vector<8x8xf32>, vector<8x8xf32>, vector<8x8xf32>, vector<8x8xf32>, vector<8x8xf32>, vector<8x8xf32> -> vector<48x8xf32>
    %212 = vector.extract_strided_slice %159 {offsets = [0, 0], sizes = [8, 8], strides = [1, 1]} : vector<8x16xf32> to vector<8x8xf32>
    %213 = vector.extract_strided_slice %159 {offsets = [0, 8], sizes = [8, 8], strides = [1, 1]} : vector<8x16xf32> to vector<8x8xf32>
    %214 = vector.extract_strided_slice %159 {offsets = [0, 0], sizes = [8, 8], strides = [1, 1]} : vector<8x16xf32> to vector<8x8xf32>
    %215 = vector.extract_strided_slice %159 {offsets = [0, 8], sizes = [8, 8], strides = [1, 1]} : vector<8x16xf32> to vector<8x8xf32>
    %216 = vector.extract_strided_slice %126 {offsets = [0, 0], sizes = [8, 8], strides = [1, 1]} : vector<8x16xf32> to vector<8x8xf32>
    %217 = vector.extract_strided_slice %126 {offsets = [0, 8], sizes = [8, 8], strides = [1, 1]} : vector<8x16xf32> to vector<8x8xf32>
    %218 = tpu.concatenate %212, %213, %214, %215, %216, %217 in 0 : vector<8x8xf32>, vector<8x8xf32>, vector<8x8xf32>, vector<8x8xf32>, vector<8x8xf32>, vector<8x8xf32> -> vector<48x8xf32>
    %219 = vector.extract_strided_slice %7 {offsets = [0, 0], sizes = [8, 8], strides = [1, 1]} : vector<16x8xf32> to vector<8x8xf32>
    %cst_151 = arith.constant dense<0.000000e+00> : vector<48x8xf32>
    %220 = tpu.matmul %211, %219, %cst_151 {dimension_numbers = #tpu.dot_dimension_numbers<[1], [0], [0], [1], [0, 0, 1, 1], [], []>} : vector<48x8xf32>, vector<8x8xf32>, vector<48x8xf32> -> vector<48x8xf32>
    %221 = vector.extract_strided_slice %7 {offsets = [8, 0], sizes = [8, 8], strides = [1, 1]} : vector<16x8xf32> to vector<8x8xf32>
    %cst_152 = arith.constant dense<0.000000e+00> : vector<48x8xf32>
    %222 = tpu.matmul %218, %221, %cst_152 {dimension_numbers = #tpu.dot_dimension_numbers<[1], [0], [0], [1], [0, 0, 1, 1], [], []>} : vector<48x8xf32>, vector<8x8xf32>, vector<48x8xf32> -> vector<48x8xf32>
    %223 = arith.addf %220, %222 : vector<48x8xf32>
    %224 = vector.broadcast %3 : vector<1x8xf32> to vector<48x8xf32>
    %225 = arith.addf %223, %224 : vector<48x8xf32>
    %cst_153 = arith.constant 0.000000e+00 : f32
    %226 = vector.broadcast %cst_153 : f32 to vector<48x8xf32>
    %227 = arith.cmpf oge, %225, %226 : vector<48x8xf32>
    %cst_154 = arith.constant 2.000000e-01 : f32
    %228 = vector.broadcast %cst_154 : f32 to vector<48x8xf32>
    %229 = arith.mulf %228, %225 : vector<48x8xf32>
    %230 = arith.select %227, %225, %229 : vector<48x8xi1>, vector<48x8xf32>
    %cst_155 = arith.constant dense<0.000000e+00> : vector<48x8xf32>
    %231 = tpu.matmul %230, %8, %cst_155 {dimension_numbers = #tpu.dot_dimension_numbers<[1], [0], [0], [1], [0, 0, 1, 1], [], []>} : vector<48x8xf32>, vector<8x8xf32>, vector<48x8xf32> -> vector<48x8xf32>
    %232 = vector.broadcast %4 : vector<1x8xf32> to vector<48x8xf32>
    %233 = arith.addf %231, %232 : vector<48x8xf32>
    %234 = vector.extract_strided_slice %204 {offsets = [0, 0], sizes = [8, 1], strides = [1, 1]} : vector<8x2xf32> to vector<8x1xf32>
    %235 = vector.extract_strided_slice %233 {offsets = [0, 0], sizes = [8, 8], strides = [1, 1]} : vector<48x8xf32> to vector<8x8xf32>
    %236 = vector.broadcast %234 : vector<8x1xf32> to vector<8x8xf32>
    %237 = arith.mulf %236, %235 : vector<8x8xf32>
    %238 = vector.extract_strided_slice %204 {offsets = [0, 1], sizes = [8, 1], strides = [1, 1]} : vector<8x2xf32> to vector<8x1xf32>
    %239 = vector.extract_strided_slice %233 {offsets = [8, 0], sizes = [8, 8], strides = [1, 1]} : vector<48x8xf32> to vector<8x8xf32>
    %240 = vector.broadcast %238 : vector<8x1xf32> to vector<8x8xf32>
    %241 = arith.mulf %240, %239 : vector<8x8xf32>
    %242 = tpu.concatenate %237, %241 in 1 : vector<8x8xf32>, vector<8x8xf32> -> vector<8x16xf32>
    %cst_156 = arith.constant 0.000000e+00 : f32
    %243 = vector.broadcast %cst_156 : f32 to vector<12x1x16xf32>
    %c0_157 = arith.constant 0 : index
    %c0_158 = arith.constant 0 : index
    %c0_159 = arith.constant 0 : index
    %244 = vector.load %arg7[%c0_157, %c0_158, %c0_159] : memref<12x1x16xf32, #tpu.memory_space<vmem>>, vector<12x1x16xf32>
    tpu.vector_store %arg7[%c0_157, %c0_158, %c0_159], %243 {strides = array<i32>} : memref<12x1x16xf32, #tpu.memory_space<vmem>>, vector<12x1x16xf32>,
    %c0_160 = arith.constant 0 : index
    %c0_161 = arith.constant 0 : index
    %245 = memref.load %arg1[%c0_160, %c0_161] : memref<3x8xi32, #tpu.memory_space<smem>>
    %246 = arith.index_cast %245 : i32 to index
    %c0_162 = arith.constant 0 : index
    %c0_163 = arith.constant 0 : index
    %247 = vector.load %arg7[%246, %c0_162, %c0_163] : memref<12x1x16xf32, #tpu.memory_space<vmem>>, vector<1x1x16xf32>
    %248 = vector.shape_cast %247 : vector<1x1x16xf32> to vector<1x16xf32>
    %249 = vector.extract_strided_slice %242 {offsets = [0, 0], sizes = [1, 16], strides = [1, 1]} : vector<8x16xf32> to vector<1x16xf32>
    %250 = arith.addf %248, %249 : vector<1x16xf32>
    %251 = arith.index_cast %245 : i32 to index
    %c0_164 = arith.constant 0 : index
    %c0_165 = arith.constant 0 : index
    %252 = vector.load %arg7[%251, %c0_164, %c0_165] : memref<12x1x16xf32, #tpu.memory_space<vmem>>, vector<1x1x16xf32>
    %253 = vector.shape_cast %252 : vector<1x1x16xf32> to vector<1x16xf32>
    %254 = vector.shape_cast %250 : vector<1x16xf32> to vector<1x1x16xf32>
    tpu.vector_store %arg7[%251, %c0_164, %c0_165], %254 {strides = array<i32>} : memref<12x1x16xf32, #tpu.memory_space<vmem>>, vector<1x1x16xf32>,
    %c0_166 = arith.constant 0 : index
    %c1_167 = arith.constant 1 : index
    %255 = memref.load %arg1[%c0_166, %c1_167] : memref<3x8xi32, #tpu.memory_space<smem>>
    %256 = arith.index_cast %255 : i32 to index
    %c0_168 = arith.constant 0 : index
    %c0_169 = arith.constant 0 : index
    %257 = vector.load %arg7[%256, %c0_168, %c0_169] : memref<12x1x16xf32, #tpu.memory_space<vmem>>, vector<1x1x16xf32>
    %258 = vector.shape_cast %257 : vector<1x1x16xf32> to vector<1x16xf32>
    %259 = vector.extract_strided_slice %242 {offsets = [1, 0], sizes = [1, 16], strides = [1, 1]} : vector<8x16xf32> to vector<1x16xf32>
    %260 = arith.addf %258, %259 : vector<1x16xf32>
    %261 = arith.index_cast %255 : i32 to index
    %c0_170 = arith.constant 0 : index
    %c0_171 = arith.constant 0 : index
    %262 = vector.load %arg7[%261, %c0_170, %c0_171] : memref<12x1x16xf32, #tpu.memory_space<vmem>>, vector<1x1x16xf32>
    %263 = vector.shape_cast %262 : vector<1x1x16xf32> to vector<1x16xf32>
    %264 = vector.shape_cast %260 : vector<1x16xf32> to vector<1x1x16xf32>
    tpu.vector_store %arg7[%261, %c0_170, %c0_171], %264 {strides = array<i32>} : memref<12x1x16xf32, #tpu.memory_space<vmem>>, vector<1x1x16xf32>,
    %c0_172 = arith.constant 0 : index
    %c2_173 = arith.constant 2 : index
    %265 = memref.load %arg1[%c0_172, %c2_173] : memref<3x8xi32, #tpu.memory_space<smem>>
    %266 = arith.index_cast %265 : i32 to index
    %c0_174 = arith.constant 0 : index
    %c0_175 = arith.constant 0 : index
    %267 = vector.load %arg7[%266, %c0_174, %c0_175] : memref<12x1x16xf32, #tpu.memory_space<vmem>>, vector<1x1x16xf32>
    %268 = vector.shape_cast %267 : vector<1x1x16xf32> to vector<1x16xf32>
    %269 = vector.extract_strided_slice %242 {offsets = [2, 0], sizes = [1, 16], strides = [1, 1]} : vector<8x16xf32> to vector<1x16xf32>
    %270 = arith.addf %268, %269 : vector<1x16xf32>
    %271 = arith.index_cast %265 : i32 to index
    %c0_176 = arith.constant 0 : index
    %c0_177 = arith.constant 0 : index
    %272 = vector.load %arg7[%271, %c0_176, %c0_177] : memref<12x1x16xf32, #tpu.memory_space<vmem>>, vector<1x1x16xf32>
    %273 = vector.shape_cast %272 : vector<1x1x16xf32> to vector<1x16xf32>
    %274 = vector.shape_cast %270 : vector<1x16xf32> to vector<1x1x16xf32>
    tpu.vector_store %arg7[%271, %c0_176, %c0_177], %274 {strides = array<i32>} : memref<12x1x16xf32, #tpu.memory_space<vmem>>, vector<1x1x16xf32>,
    %c0_178 = arith.constant 0 : index
    %c3_179 = arith.constant 3 : index
    %275 = memref.load %arg1[%c0_178, %c3_179] : memref<3x8xi32, #tpu.memory_space<smem>>
    %276 = arith.index_cast %275 : i32 to index
    %c0_180 = arith.constant 0 : index
    %c0_181 = arith.constant 0 : index
    %277 = vector.load %arg7[%276, %c0_180, %c0_181] : memref<12x1x16xf32, #tpu.memory_space<vmem>>, vector<1x1x16xf32>
    %278 = vector.shape_cast %277 : vector<1x1x16xf32> to vector<1x16xf32>
    %279 = vector.extract_strided_slice %242 {offsets = [3, 0], sizes = [1, 16], strides = [1, 1]} : vector<8x16xf32> to vector<1x16xf32>
    %280 = arith.addf %278, %279 : vector<1x16xf32>
    %281 = arith.index_cast %275 : i32 to index
    %c0_182 = arith.constant 0 : index
    %c0_183 = arith.constant 0 : index
    %282 = vector.load %arg7[%281, %c0_182, %c0_183] : memref<12x1x16xf32, #tpu.memory_space<vmem>>, vector<1x1x16xf32>
    %283 = vector.shape_cast %282 : vector<1x1x16xf32> to vector<1x16xf32>
    %284 = vector.shape_cast %280 : vector<1x16xf32> to vector<1x1x16xf32>
    tpu.vector_store %arg7[%281, %c0_182, %c0_183], %284 {strides = array<i32>} : memref<12x1x16xf32, #tpu.memory_space<vmem>>, vector<1x1x16xf32>,
    %c0_184 = arith.constant 0 : index
    %c4_185 = arith.constant 4 : index
    %285 = memref.load %arg1[%c0_184, %c4_185] : memref<3x8xi32, #tpu.memory_space<smem>>
    %286 = arith.index_cast %285 : i32 to index
    %c0_186 = arith.constant 0 : index
    %c0_187 = arith.constant 0 : index
    %287 = vector.load %arg7[%286, %c0_186, %c0_187] : memref<12x1x16xf32, #tpu.memory_space<vmem>>, vector<1x1x16xf32>
    %288 = vector.shape_cast %287 : vector<1x1x16xf32> to vector<1x16xf32>
    %289 = vector.extract_strided_slice %242 {offsets = [4, 0], sizes = [1, 16], strides = [1, 1]} : vector<8x16xf32> to vector<1x16xf32>
    %290 = arith.addf %288, %289 : vector<1x16xf32>
    %291 = arith.index_cast %285 : i32 to index
    %c0_188 = arith.constant 0 : index
    %c0_189 = arith.constant 0 : index
    %292 = vector.load %arg7[%291, %c0_188, %c0_189] : memref<12x1x16xf32, #tpu.memory_space<vmem>>, vector<1x1x16xf32>
    %293 = vector.shape_cast %292 : vector<1x1x16xf32> to vector<1x16xf32>
    %294 = vector.shape_cast %290 : vector<1x16xf32> to vector<1x1x16xf32>
    tpu.vector_store %arg7[%291, %c0_188, %c0_189], %294 {strides = array<i32>} : memref<12x1x16xf32, #tpu.memory_space<vmem>>, vector<1x1x16xf32>,
    %c0_190 = arith.constant 0 : index
    %c5_191 = arith.constant 5 : index
    %295 = memref.load %arg1[%c0_190, %c5_191] : memref<3x8xi32, #tpu.memory_space<smem>>
    %296 = arith.index_cast %295 : i32 to index
    %c0_192 = arith.constant 0 : index
    %c0_193 = arith.constant 0 : index
    %297 = vector.load %arg7[%296, %c0_192, %c0_193] : memref<12x1x16xf32, #tpu.memory_space<vmem>>, vector<1x1x16xf32>
    %298 = vector.shape_cast %297 : vector<1x1x16xf32> to vector<1x16xf32>
    %299 = vector.extract_strided_slice %242 {offsets = [5, 0], sizes = [1, 16], strides = [1, 1]} : vector<8x16xf32> to vector<1x16xf32>
    %300 = arith.addf %298, %299 : vector<1x16xf32>
    %301 = arith.index_cast %295 : i32 to index
    %c0_194 = arith.constant 0 : index
    %c0_195 = arith.constant 0 : index
    %302 = vector.load %arg7[%301, %c0_194, %c0_195] : memref<12x1x16xf32, #tpu.memory_space<vmem>>, vector<1x1x16xf32>
    %303 = vector.shape_cast %302 : vector<1x1x16xf32> to vector<1x16xf32>
    %304 = vector.shape_cast %300 : vector<1x16xf32> to vector<1x1x16xf32>
    tpu.vector_store %arg7[%301, %c0_194, %c0_195], %304 {strides = array<i32>} : memref<12x1x16xf32, #tpu.memory_space<vmem>>, vector<1x1x16xf32>,
    %c0_196 = arith.constant 0 : index
    %c6_197 = arith.constant 6 : index
    %305 = memref.load %arg1[%c0_196, %c6_197] : memref<3x8xi32, #tpu.memory_space<smem>>
    %306 = arith.index_cast %305 : i32 to index
    %c0_198 = arith.constant 0 : index
    %c0_199 = arith.constant 0 : index
    %307 = vector.load %arg7[%306, %c0_198, %c0_199] : memref<12x1x16xf32, #tpu.memory_space<vmem>>, vector<1x1x16xf32>
    %308 = vector.shape_cast %307 : vector<1x1x16xf32> to vector<1x16xf32>
    %309 = vector.extract_strided_slice %242 {offsets = [6, 0], sizes = [1, 16], strides = [1, 1]} : vector<8x16xf32> to vector<1x16xf32>
    %310 = arith.addf %308, %309 : vector<1x16xf32>
    %311 = arith.index_cast %305 : i32 to index
    %c0_200 = arith.constant 0 : index
    %c0_201 = arith.constant 0 : index
    %312 = vector.load %arg7[%311, %c0_200, %c0_201] : memref<12x1x16xf32, #tpu.memory_space<vmem>>, vector<1x1x16xf32>
    %313 = vector.shape_cast %312 : vector<1x1x16xf32> to vector<1x16xf32>
    %314 = vector.shape_cast %310 : vector<1x16xf32> to vector<1x1x16xf32>
    tpu.vector_store %arg7[%311, %c0_200, %c0_201], %314 {strides = array<i32>} : memref<12x1x16xf32, #tpu.memory_space<vmem>>, vector<1x1x16xf32>,
    %c0_202 = arith.constant 0 : index
    %c7_203 = arith.constant 7 : index
    %315 = memref.load %arg1[%c0_202, %c7_203] : memref<3x8xi32, #tpu.memory_space<smem>>
    %316 = arith.index_cast %315 : i32 to index
    %c0_204 = arith.constant 0 : index
    %c0_205 = arith.constant 0 : index
    %317 = vector.load %arg7[%316, %c0_204, %c0_205] : memref<12x1x16xf32, #tpu.memory_space<vmem>>, vector<1x1x16xf32>
    %318 = vector.shape_cast %317 : vector<1x1x16xf32> to vector<1x16xf32>
    %319 = vector.extract_strided_slice %242 {offsets = [7, 0], sizes = [1, 16], strides = [1, 1]} : vector<8x16xf32> to vector<1x16xf32>
    %320 = arith.addf %318, %319 : vector<1x16xf32>
    %321 = arith.index_cast %315 : i32 to index
    %c0_206 = arith.constant 0 : index
    %c0_207 = arith.constant 0 : index
    %322 = vector.load %arg7[%321, %c0_206, %c0_207] : memref<12x1x16xf32, #tpu.memory_space<vmem>>, vector<1x1x16xf32>
    %323 = vector.shape_cast %322 : vector<1x1x16xf32> to vector<1x16xf32>
    %324 = vector.shape_cast %320 : vector<1x16xf32> to vector<1x1x16xf32>
    tpu.vector_store %arg7[%321, %c0_206, %c0_207], %324 {strides = array<i32>} : memref<12x1x16xf32, #tpu.memory_space<vmem>>, vector<1x1x16xf32>,
    %c0_208 = arith.constant 0 : index
    %c0_209 = arith.constant 0 : index
    %c0_210 = arith.constant 0 : index
    %325 = vector.load %arg7[%c0_208, %c0_209, %c0_210] : memref<12x1x16xf32, #tpu.memory_space<vmem>>, vector<1x1x16xf32>
    %326 = vector.shape_cast %325 : vector<1x1x16xf32> to vector<1x16xf32>
    %c1_211 = arith.constant 1 : index
    %c0_212 = arith.constant 0 : index
    %c0_213 = arith.constant 0 : index
    %327 = vector.load %arg7[%c1_211, %c0_212, %c0_213] : memref<12x1x16xf32, #tpu.memory_space<vmem>>, vector<1x1x16xf32>
    %328 = vector.shape_cast %327 : vector<1x1x16xf32> to vector<1x16xf32>
    %c2_214 = arith.constant 2 : index
    %c0_215 = arith.constant 0 : index
    %c0_216 = arith.constant 0 : index
    %329 = vector.load %arg7[%c2_214, %c0_215, %c0_216] : memref<12x1x16xf32, #tpu.memory_space<vmem>>, vector<1x1x16xf32>
    %330 = vector.shape_cast %329 : vector<1x1x16xf32> to vector<1x16xf32>
    %c3_217 = arith.constant 3 : index
    %c0_218 = arith.constant 0 : index
    %c0_219 = arith.constant 0 : index
    %331 = vector.load %arg7[%c3_217, %c0_218, %c0_219] : memref<12x1x16xf32, #tpu.memory_space<vmem>>, vector<1x1x16xf32>
    %332 = vector.shape_cast %331 : vector<1x1x16xf32> to vector<1x16xf32>
    %c4_220 = arith.constant 4 : index
    %c0_221 = arith.constant 0 : index
    %c0_222 = arith.constant 0 : index
    %333 = vector.load %arg7[%c4_220, %c0_221, %c0_222] : memref<12x1x16xf32, #tpu.memory_space<vmem>>, vector<1x1x16xf32>
    %334 = vector.shape_cast %333 : vector<1x1x16xf32> to vector<1x16xf32>
    %c5_223 = arith.constant 5 : index
    %c0_224 = arith.constant 0 : index
    %c0_225 = arith.constant 0 : index
    %335 = vector.load %arg7[%c5_223, %c0_224, %c0_225] : memref<12x1x16xf32, #tpu.memory_space<vmem>>, vector<1x1x16xf32>
    %336 = vector.shape_cast %335 : vector<1x1x16xf32> to vector<1x16xf32>
    %c6_226 = arith.constant 6 : index
    %c0_227 = arith.constant 0 : index
    %c0_228 = arith.constant 0 : index
    %337 = vector.load %arg7[%c6_226, %c0_227, %c0_228] : memref<12x1x16xf32, #tpu.memory_space<vmem>>, vector<1x1x16xf32>
    %338 = vector.shape_cast %337 : vector<1x1x16xf32> to vector<1x16xf32>
    %c7_229 = arith.constant 7 : index
    %c0_230 = arith.constant 0 : index
    %c0_231 = arith.constant 0 : index
    %339 = vector.load %arg7[%c7_229, %c0_230, %c0_231] : memref<12x1x16xf32, #tpu.memory_space<vmem>>, vector<1x1x16xf32>
    %340 = vector.shape_cast %339 : vector<1x1x16xf32> to vector<1x16xf32>
    %c8_232 = arith.constant 8 : index
    %c0_233 = arith.constant 0 : index
    %c0_234 = arith.constant 0 : index
    %341 = vector.load %arg7[%c8_232, %c0_233, %c0_234] : memref<12x1x16xf32, #tpu.memory_space<vmem>>, vector<1x1x16xf32>
    %342 = vector.shape_cast %341 : vector<1x1x16xf32> to vector<1x16xf32>
    %c9_235 = arith.constant 9 : index
    %c0_236 = arith.constant 0 : index
    %c0_237 = arith.constant 0 : index
    %343 = vector.load %arg7[%c9_235, %c0_236, %c0_237] : memref<12x1x16xf32, #tpu.memory_space<vmem>>, vector<1x1x16xf32>
    %344 = vector.shape_cast %343 : vector<1x1x16xf32> to vector<1x16xf32>
    %c10_238 = arith.constant 10 : index
    %c0_239 = arith.constant 0 : index
    %c0_240 = arith.constant 0 : index
    %345 = vector.load %arg7[%c10_238, %c0_239, %c0_240] : memref<12x1x16xf32, #tpu.memory_space<vmem>>, vector<1x1x16xf32>
    %346 = vector.shape_cast %345 : vector<1x1x16xf32> to vector<1x16xf32>
    %c11_241 = arith.constant 11 : index
    %c0_242 = arith.constant 0 : index
    %c0_243 = arith.constant 0 : index
    %347 = vector.load %arg7[%c11_241, %c0_242, %c0_243] : memref<12x1x16xf32, #tpu.memory_space<vmem>>, vector<1x1x16xf32>
    %348 = vector.shape_cast %347 : vector<1x1x16xf32> to vector<1x16xf32>
    %349 = tpu.concatenate %326, %328, %330, %332, %334, %336, %338, %340, %342, %344, %346, %348 in 0 : vector<1x16xf32>, vector<1x16xf32>, vector<1x16xf32>, vector<1x16xf32>, vector<1x16xf32>, vector<1x16xf32>, vector<1x16xf32>, vector<1x16xf32>, vector<1x16xf32>, vector<1x16xf32>, vector<1x16xf32>, vector<1x16xf32> -> vector<12x16xf32>
    %350 = vector.broadcast %5 : vector<1x16xf32> to vector<12x16xf32>
    %351 = arith.mulf %350, %12 : vector<12x16xf32>
    %352 = arith.addf %351, %349 : vector<12x16xf32>
    %353 = vector.broadcast %6 : vector<1x16xf32> to vector<12x16xf32>
    %354 = arith.addf %352, %353 : vector<12x16xf32>
    %cst_244 = arith.constant 0.000000e+00 : f32
    %355 = vector.broadcast %cst_244 : f32 to vector<12x16xf32>
    %356 = arith.subf %355, %354 : vector<12x16xf32>
    %357 = math.exp %356 : vector<12x16xf32>
    %cst_245 = arith.constant 1.000000e+00 : f32
    %358 = vector.broadcast %cst_245 : f32 to vector<12x16xf32>
    %359 = arith.addf %358, %357 : vector<12x16xf32>
    %360 = tpu.reciprocal %359 {approx = true} : vector<12x16xf32> -> vector<12x16xf32>
    %c0_246 = arith.constant 0 : index
    %c0_247 = arith.constant 0 : index
    %361 = vector.load %arg5[%c0_246, %c0_247] : memref<36x16xf32, #tpu.memory_space<vmem>>, vector<12x16xf32>
    tpu.vector_store %arg5[%c0_246, %c0_247], %360 {strides = array<i32>} : memref<36x16xf32, #tpu.memory_space<vmem>>, vector<12x16xf32>,
    %362 = vector.extract_strided_slice %204 {offsets = [0, 0], sizes = [8, 1], strides = [1, 1]} : vector<8x2xf32> to vector<8x1xf32>
    %363 = vector.extract_strided_slice %233 {offsets = [16, 0], sizes = [8, 8], strides = [1, 1]} : vector<48x8xf32> to vector<8x8xf32>
    %364 = vector.broadcast %362 : vector<8x1xf32> to vector<8x8xf32>
    %365 = arith.mulf %364, %363 : vector<8x8xf32>
    %366 = vector.extract_strided_slice %204 {offsets = [0, 1], sizes = [8, 1], strides = [1, 1]} : vector<8x2xf32> to vector<8x1xf32>
    %367 = vector.extract_strided_slice %233 {offsets = [24, 0], sizes = [8, 8], strides = [1, 1]} : vector<48x8xf32> to vector<8x8xf32>
    %368 = vector.broadcast %366 : vector<8x1xf32> to vector<8x8xf32>
    %369 = arith.mulf %368, %367 : vector<8x8xf32>
    %370 = tpu.concatenate %365, %369 in 1 : vector<8x8xf32>, vector<8x8xf32> -> vector<8x16xf32>
    %cst_248 = arith.constant 0.000000e+00 : f32
    %371 = vector.broadcast %cst_248 : f32 to vector<12x1x16xf32>
    %c0_249 = arith.constant 0 : index
    %c0_250 = arith.constant 0 : index
    %c0_251 = arith.constant 0 : index
    %372 = vector.load %arg7[%c0_249, %c0_250, %c0_251] : memref<12x1x16xf32, #tpu.memory_space<vmem>>, vector<12x1x16xf32>
    tpu.vector_store %arg7[%c0_249, %c0_250, %c0_251], %371 {strides = array<i32>} : memref<12x1x16xf32, #tpu.memory_space<vmem>>, vector<12x1x16xf32>,
    %c1_252 = arith.constant 1 : index
    %c0_253 = arith.constant 0 : index
    %373 = memref.load %arg1[%c1_252, %c0_253] : memref<3x8xi32, #tpu.memory_space<smem>>
    %374 = arith.index_cast %373 : i32 to index
    %c0_254 = arith.constant 0 : index
    %c0_255 = arith.constant 0 : index
    %375 = vector.load %arg7[%374, %c0_254, %c0_255] : memref<12x1x16xf32, #tpu.memory_space<vmem>>, vector<1x1x16xf32>
    %376 = vector.shape_cast %375 : vector<1x1x16xf32> to vector<1x16xf32>
    %377 = vector.extract_strided_slice %370 {offsets = [0, 0], sizes = [1, 16], strides = [1, 1]} : vector<8x16xf32> to vector<1x16xf32>
    %378 = arith.addf %376, %377 : vector<1x16xf32>
    %379 = arith.index_cast %373 : i32 to index
    %c0_256 = arith.constant 0 : index
    %c0_257 = arith.constant 0 : index
    %380 = vector.load %arg7[%379, %c0_256, %c0_257] : memref<12x1x16xf32, #tpu.memory_space<vmem>>, vector<1x1x16xf32>
    %381 = vector.shape_cast %380 : vector<1x1x16xf32> to vector<1x16xf32>
    %382 = vector.shape_cast %378 : vector<1x16xf32> to vector<1x1x16xf32>
    tpu.vector_store %arg7[%379, %c0_256, %c0_257], %382 {strides = array<i32>} : memref<12x1x16xf32, #tpu.memory_space<vmem>>, vector<1x1x16xf32>,
    %c1_258 = arith.constant 1 : index
    %c1_259 = arith.constant 1 : index
    %383 = memref.load %arg1[%c1_258, %c1_259] : memref<3x8xi32, #tpu.memory_space<smem>>
    %384 = arith.index_cast %383 : i32 to index
    %c0_260 = arith.constant 0 : index
    %c0_261 = arith.constant 0 : index
    %385 = vector.load %arg7[%384, %c0_260, %c0_261] : memref<12x1x16xf32, #tpu.memory_space<vmem>>, vector<1x1x16xf32>
    %386 = vector.shape_cast %385 : vector<1x1x16xf32> to vector<1x16xf32>
    %387 = vector.extract_strided_slice %370 {offsets = [1, 0], sizes = [1, 16], strides = [1, 1]} : vector<8x16xf32> to vector<1x16xf32>
    %388 = arith.addf %386, %387 : vector<1x16xf32>
    %389 = arith.index_cast %383 : i32 to index
    %c0_262 = arith.constant 0 : index
    %c0_263 = arith.constant 0 : index
    %390 = vector.load %arg7[%389, %c0_262, %c0_263] : memref<12x1x16xf32, #tpu.memory_space<vmem>>, vector<1x1x16xf32>
    %391 = vector.shape_cast %390 : vector<1x1x16xf32> to vector<1x16xf32>
    %392 = vector.shape_cast %388 : vector<1x16xf32> to vector<1x1x16xf32>
    tpu.vector_store %arg7[%389, %c0_262, %c0_263], %392 {strides = array<i32>} : memref<12x1x16xf32, #tpu.memory_space<vmem>>, vector<1x1x16xf32>,
    %c1_264 = arith.constant 1 : index
    %c2_265 = arith.constant 2 : index
    %393 = memref.load %arg1[%c1_264, %c2_265] : memref<3x8xi32, #tpu.memory_space<smem>>
    %394 = arith.index_cast %393 : i32 to index
    %c0_266 = arith.constant 0 : index
    %c0_267 = arith.constant 0 : index
    %395 = vector.load %arg7[%394, %c0_266, %c0_267] : memref<12x1x16xf32, #tpu.memory_space<vmem>>, vector<1x1x16xf32>
    %396 = vector.shape_cast %395 : vector<1x1x16xf32> to vector<1x16xf32>
    %397 = vector.extract_strided_slice %370 {offsets = [2, 0], sizes = [1, 16], strides = [1, 1]} : vector<8x16xf32> to vector<1x16xf32>
    %398 = arith.addf %396, %397 : vector<1x16xf32>
    %399 = arith.index_cast %393 : i32 to index
    %c0_268 = arith.constant 0 : index
    %c0_269 = arith.constant 0 : index
    %400 = vector.load %arg7[%399, %c0_268, %c0_269] : memref<12x1x16xf32, #tpu.memory_space<vmem>>, vector<1x1x16xf32>
    %401 = vector.shape_cast %400 : vector<1x1x16xf32> to vector<1x16xf32>
    %402 = vector.shape_cast %398 : vector<1x16xf32> to vector<1x1x16xf32>
    tpu.vector_store %arg7[%399, %c0_268, %c0_269], %402 {strides = array<i32>} : memref<12x1x16xf32, #tpu.memory_space<vmem>>, vector<1x1x16xf32>,
    %c1_270 = arith.constant 1 : index
    %c3_271 = arith.constant 3 : index
    %403 = memref.load %arg1[%c1_270, %c3_271] : memref<3x8xi32, #tpu.memory_space<smem>>
    %404 = arith.index_cast %403 : i32 to index
    %c0_272 = arith.constant 0 : index
    %c0_273 = arith.constant 0 : index
    %405 = vector.load %arg7[%404, %c0_272, %c0_273] : memref<12x1x16xf32, #tpu.memory_space<vmem>>, vector<1x1x16xf32>
    %406 = vector.shape_cast %405 : vector<1x1x16xf32> to vector<1x16xf32>
    %407 = vector.extract_strided_slice %370 {offsets = [3, 0], sizes = [1, 16], strides = [1, 1]} : vector<8x16xf32> to vector<1x16xf32>
    %408 = arith.addf %406, %407 : vector<1x16xf32>
    %409 = arith.index_cast %403 : i32 to index
    %c0_274 = arith.constant 0 : index
    %c0_275 = arith.constant 0 : index
    %410 = vector.load %arg7[%409, %c0_274, %c0_275] : memref<12x1x16xf32, #tpu.memory_space<vmem>>, vector<1x1x16xf32>
    %411 = vector.shape_cast %410 : vector<1x1x16xf32> to vector<1x16xf32>
    %412 = vector.shape_cast %408 : vector<1x16xf32> to vector<1x1x16xf32>
    tpu.vector_store %arg7[%409, %c0_274, %c0_275], %412 {strides = array<i32>} : memref<12x1x16xf32, #tpu.memory_space<vmem>>, vector<1x1x16xf32>,
    %c1_276 = arith.constant 1 : index
    %c4_277 = arith.constant 4 : index
    %413 = memref.load %arg1[%c1_276, %c4_277] : memref<3x8xi32, #tpu.memory_space<smem>>
    %414 = arith.index_cast %413 : i32 to index
    %c0_278 = arith.constant 0 : index
    %c0_279 = arith.constant 0 : index
    %415 = vector.load %arg7[%414, %c0_278, %c0_279] : memref<12x1x16xf32, #tpu.memory_space<vmem>>, vector<1x1x16xf32>
    %416 = vector.shape_cast %415 : vector<1x1x16xf32> to vector<1x16xf32>
    %417 = vector.extract_strided_slice %370 {offsets = [4, 0], sizes = [1, 16], strides = [1, 1]} : vector<8x16xf32> to vector<1x16xf32>
    %418 = arith.addf %416, %417 : vector<1x16xf32>
    %419 = arith.index_cast %413 : i32 to index
    %c0_280 = arith.constant 0 : index
    %c0_281 = arith.constant 0 : index
    %420 = vector.load %arg7[%419, %c0_280, %c0_281] : memref<12x1x16xf32, #tpu.memory_space<vmem>>, vector<1x1x16xf32>
    %421 = vector.shape_cast %420 : vector<1x1x16xf32> to vector<1x16xf32>
    %422 = vector.shape_cast %418 : vector<1x16xf32> to vector<1x1x16xf32>
    tpu.vector_store %arg7[%419, %c0_280, %c0_281], %422 {strides = array<i32>} : memref<12x1x16xf32, #tpu.memory_space<vmem>>, vector<1x1x16xf32>,
    %c1_282 = arith.constant 1 : index
    %c5_283 = arith.constant 5 : index
    %423 = memref.load %arg1[%c1_282, %c5_283] : memref<3x8xi32, #tpu.memory_space<smem>>
    %424 = arith.index_cast %423 : i32 to index
    %c0_284 = arith.constant 0 : index
    %c0_285 = arith.constant 0 : index
    %425 = vector.load %arg7[%424, %c0_284, %c0_285] : memref<12x1x16xf32, #tpu.memory_space<vmem>>, vector<1x1x16xf32>
    %426 = vector.shape_cast %425 : vector<1x1x16xf32> to vector<1x16xf32>
    %427 = vector.extract_strided_slice %370 {offsets = [5, 0], sizes = [1, 16], strides = [1, 1]} : vector<8x16xf32> to vector<1x16xf32>
    %428 = arith.addf %426, %427 : vector<1x16xf32>
    %429 = arith.index_cast %423 : i32 to index
    %c0_286 = arith.constant 0 : index
    %c0_287 = arith.constant 0 : index
    %430 = vector.load %arg7[%429, %c0_286, %c0_287] : memref<12x1x16xf32, #tpu.memory_space<vmem>>, vector<1x1x16xf32>
    %431 = vector.shape_cast %430 : vector<1x1x16xf32> to vector<1x16xf32>
    %432 = vector.shape_cast %428 : vector<1x16xf32> to vector<1x1x16xf32>
    tpu.vector_store %arg7[%429, %c0_286, %c0_287], %432 {strides = array<i32>} : memref<12x1x16xf32, #tpu.memory_space<vmem>>, vector<1x1x16xf32>,
    %c1_288 = arith.constant 1 : index
    %c6_289 = arith.constant 6 : index
    %433 = memref.load %arg1[%c1_288, %c6_289] : memref<3x8xi32, #tpu.memory_space<smem>>
    %434 = arith.index_cast %433 : i32 to index
    %c0_290 = arith.constant 0 : index
    %c0_291 = arith.constant 0 : index
    %435 = vector.load %arg7[%434, %c0_290, %c0_291] : memref<12x1x16xf32, #tpu.memory_space<vmem>>, vector<1x1x16xf32>
    %436 = vector.shape_cast %435 : vector<1x1x16xf32> to vector<1x16xf32>
    %437 = vector.extract_strided_slice %370 {offsets = [6, 0], sizes = [1, 16], strides = [1, 1]} : vector<8x16xf32> to vector<1x16xf32>
    %438 = arith.addf %436, %437 : vector<1x16xf32>
    %439 = arith.index_cast %433 : i32 to index
    %c0_292 = arith.constant 0 : index
    %c0_293 = arith.constant 0 : index
    %440 = vector.load %arg7[%439, %c0_292, %c0_293] : memref<12x1x16xf32, #tpu.memory_space<vmem>>, vector<1x1x16xf32>
    %441 = vector.shape_cast %440 : vector<1x1x16xf32> to vector<1x16xf32>
    %442 = vector.shape_cast %438 : vector<1x16xf32> to vector<1x1x16xf32>
    tpu.vector_store %arg7[%439, %c0_292, %c0_293], %442 {strides = array<i32>} : memref<12x1x16xf32, #tpu.memory_space<vmem>>, vector<1x1x16xf32>,
    %c1_294 = arith.constant 1 : index
    %c7_295 = arith.constant 7 : index
    %443 = memref.load %arg1[%c1_294, %c7_295] : memref<3x8xi32, #tpu.memory_space<smem>>
    %444 = arith.index_cast %443 : i32 to index
    %c0_296 = arith.constant 0 : index
    %c0_297 = arith.constant 0 : index
    %445 = vector.load %arg7[%444, %c0_296, %c0_297] : memref<12x1x16xf32, #tpu.memory_space<vmem>>, vector<1x1x16xf32>
    %446 = vector.shape_cast %445 : vector<1x1x16xf32> to vector<1x16xf32>
    %447 = vector.extract_strided_slice %370 {offsets = [7, 0], sizes = [1, 16], strides = [1, 1]} : vector<8x16xf32> to vector<1x16xf32>
    %448 = arith.addf %446, %447 : vector<1x16xf32>
    %449 = arith.index_cast %443 : i32 to index
    %c0_298 = arith.constant 0 : index
    %c0_299 = arith.constant 0 : index
    %450 = vector.load %arg7[%449, %c0_298, %c0_299] : memref<12x1x16xf32, #tpu.memory_space<vmem>>, vector<1x1x16xf32>
    %451 = vector.shape_cast %450 : vector<1x1x16xf32> to vector<1x16xf32>
    %452 = vector.shape_cast %448 : vector<1x16xf32> to vector<1x1x16xf32>
    tpu.vector_store %arg7[%449, %c0_298, %c0_299], %452 {strides = array<i32>} : memref<12x1x16xf32, #tpu.memory_space<vmem>>, vector<1x1x16xf32>,
    %c0_300 = arith.constant 0 : index
    %c0_301 = arith.constant 0 : index
    %c0_302 = arith.constant 0 : index
    %453 = vector.load %arg7[%c0_300, %c0_301, %c0_302] : memref<12x1x16xf32, #tpu.memory_space<vmem>>, vector<1x1x16xf32>
    %454 = vector.shape_cast %453 : vector<1x1x16xf32> to vector<1x16xf32>
    %c1_303 = arith.constant 1 : index
    %c0_304 = arith.constant 0 : index
    %c0_305 = arith.constant 0 : index
    %455 = vector.load %arg7[%c1_303, %c0_304, %c0_305] : memref<12x1x16xf32, #tpu.memory_space<vmem>>, vector<1x1x16xf32>
    %456 = vector.shape_cast %455 : vector<1x1x16xf32> to vector<1x16xf32>
    %c2_306 = arith.constant 2 : index
    %c0_307 = arith.constant 0 : index
    %c0_308 = arith.constant 0 : index
    %457 = vector.load %arg7[%c2_306, %c0_307, %c0_308] : memref<12x1x16xf32, #tpu.memory_space<vmem>>, vector<1x1x16xf32>
    %458 = vector.shape_cast %457 : vector<1x1x16xf32> to vector<1x16xf32>
    %c3_309 = arith.constant 3 : index
    %c0_310 = arith.constant 0 : index
    %c0_311 = arith.constant 0 : index
    %459 = vector.load %arg7[%c3_309, %c0_310, %c0_311] : memref<12x1x16xf32, #tpu.memory_space<vmem>>, vector<1x1x16xf32>
    %460 = vector.shape_cast %459 : vector<1x1x16xf32> to vector<1x16xf32>
    %c4_312 = arith.constant 4 : index
    %c0_313 = arith.constant 0 : index
    %c0_314 = arith.constant 0 : index
    %461 = vector.load %arg7[%c4_312, %c0_313, %c0_314] : memref<12x1x16xf32, #tpu.memory_space<vmem>>, vector<1x1x16xf32>
    %462 = vector.shape_cast %461 : vector<1x1x16xf32> to vector<1x16xf32>
    %c5_315 = arith.constant 5 : index
    %c0_316 = arith.constant 0 : index
    %c0_317 = arith.constant 0 : index
    %463 = vector.load %arg7[%c5_315, %c0_316, %c0_317] : memref<12x1x16xf32, #tpu.memory_space<vmem>>, vector<1x1x16xf32>
    %464 = vector.shape_cast %463 : vector<1x1x16xf32> to vector<1x16xf32>
    %c6_318 = arith.constant 6 : index
    %c0_319 = arith.constant 0 : index
    %c0_320 = arith.constant 0 : index
    %465 = vector.load %arg7[%c6_318, %c0_319, %c0_320] : memref<12x1x16xf32, #tpu.memory_space<vmem>>, vector<1x1x16xf32>
    %466 = vector.shape_cast %465 : vector<1x1x16xf32> to vector<1x16xf32>
    %c7_321 = arith.constant 7 : index
    %c0_322 = arith.constant 0 : index
    %c0_323 = arith.constant 0 : index
    %467 = vector.load %arg7[%c7_321, %c0_322, %c0_323] : memref<12x1x16xf32, #tpu.memory_space<vmem>>, vector<1x1x16xf32>
    %468 = vector.shape_cast %467 : vector<1x1x16xf32> to vector<1x16xf32>
    %c8_324 = arith.constant 8 : index
    %c0_325 = arith.constant 0 : index
    %c0_326 = arith.constant 0 : index
    %469 = vector.load %arg7[%c8_324, %c0_325, %c0_326] : memref<12x1x16xf32, #tpu.memory_space<vmem>>, vector<1x1x16xf32>
    %470 = vector.shape_cast %469 : vector<1x1x16xf32> to vector<1x16xf32>
    %c9_327 = arith.constant 9 : index
    %c0_328 = arith.constant 0 : index
    %c0_329 = arith.constant 0 : index
    %471 = vector.load %arg7[%c9_327, %c0_328, %c0_329] : memref<12x1x16xf32, #tpu.memory_space<vmem>>, vector<1x1x16xf32>
    %472 = vector.shape_cast %471 : vector<1x1x16xf32> to vector<1x16xf32>
    %c10_330 = arith.constant 10 : index
    %c0_331 = arith.constant 0 : index
    %c0_332 = arith.constant 0 : index
    %473 = vector.load %arg7[%c10_330, %c0_331, %c0_332] : memref<12x1x16xf32, #tpu.memory_space<vmem>>, vector<1x1x16xf32>
    %474 = vector.shape_cast %473 : vector<1x1x16xf32> to vector<1x16xf32>
    %c11_333 = arith.constant 11 : index
    %c0_334 = arith.constant 0 : index
    %c0_335 = arith.constant 0 : index
    %475 = vector.load %arg7[%c11_333, %c0_334, %c0_335] : memref<12x1x16xf32, #tpu.memory_space<vmem>>, vector<1x1x16xf32>
    %476 = vector.shape_cast %475 : vector<1x1x16xf32> to vector<1x16xf32>
    %477 = tpu.concatenate %454, %456, %458, %460, %462, %464, %466, %468, %470, %472, %474, %476 in 0 : vector<1x16xf32>, vector<1x16xf32>, vector<1x16xf32>, vector<1x16xf32>, vector<1x16xf32>, vector<1x16xf32>, vector<1x16xf32>, vector<1x16xf32>, vector<1x16xf32>, vector<1x16xf32>, vector<1x16xf32>, vector<1x16xf32> -> vector<12x16xf32>
    %478 = vector.broadcast %5 : vector<1x16xf32> to vector<12x16xf32>
    %479 = arith.mulf %478, %12 : vector<12x16xf32>
    %480 = arith.addf %479, %477 : vector<12x16xf32>
    %481 = vector.broadcast %6 : vector<1x16xf32> to vector<12x16xf32>
    %482 = arith.addf %480, %481 : vector<12x16xf32>
    %cst_336 = arith.constant 0.000000e+00 : f32
    %483 = vector.broadcast %cst_336 : f32 to vector<12x16xf32>
    %484 = arith.subf %483, %482 : vector<12x16xf32>
    %485 = math.exp %484 : vector<12x16xf32>
    %cst_337 = arith.constant 1.000000e+00 : f32
    %486 = vector.broadcast %cst_337 : f32 to vector<12x16xf32>
    %487 = arith.addf %486, %485 : vector<12x16xf32>
    %488 = tpu.reciprocal %487 {approx = true} : vector<12x16xf32> -> vector<12x16xf32>
    %c12 = arith.constant 12 : index
    %c0_338 = arith.constant 0 : index
    %489 = vector.load %arg5[%c12, %c0_338] : memref<36x16xf32, #tpu.memory_space<vmem>>, vector<12x16xf32>
    tpu.vector_store %arg5[%c12, %c0_338], %488 {strides = array<i32>} : memref<36x16xf32, #tpu.memory_space<vmem>>, vector<12x16xf32>,
    %490 = vector.extract_strided_slice %204 {offsets = [0, 0], sizes = [8, 1], strides = [1, 1]} : vector<8x2xf32> to vector<8x1xf32>
    %491 = vector.extract_strided_slice %233 {offsets = [32, 0], sizes = [8, 8], strides = [1, 1]} : vector<48x8xf32> to vector<8x8xf32>
    %492 = vector.broadcast %490 : vector<8x1xf32> to vector<8x8xf32>
    %493 = arith.mulf %492, %491 : vector<8x8xf32>
    %494 = vector.extract_strided_slice %204 {offsets = [0, 1], sizes = [8, 1], strides = [1, 1]} : vector<8x2xf32> to vector<8x1xf32>
    %495 = vector.extract_strided_slice %233 {offsets = [40, 0], sizes = [8, 8], strides = [1, 1]} : vector<48x8xf32> to vector<8x8xf32>
    %496 = vector.broadcast %494 : vector<8x1xf32> to vector<8x8xf32>
    %497 = arith.mulf %496, %495 : vector<8x8xf32>
    %498 = tpu.concatenate %493, %497 in 1 : vector<8x8xf32>, vector<8x8xf32> -> vector<8x16xf32>
    %cst_339 = arith.constant 0.000000e+00 : f32
    %499 = vector.broadcast %cst_339 : f32 to vector<12x1x16xf32>
    %c0_340 = arith.constant 0 : index
    %c0_341 = arith.constant 0 : index
    %c0_342 = arith.constant 0 : index
    %500 = vector.load %arg7[%c0_340, %c0_341, %c0_342] : memref<12x1x16xf32, #tpu.memory_space<vmem>>, vector<12x1x16xf32>
    tpu.vector_store %arg7[%c0_340, %c0_341, %c0_342], %499 {strides = array<i32>} : memref<12x1x16xf32, #tpu.memory_space<vmem>>, vector<12x1x16xf32>,
    %c2_343 = arith.constant 2 : index
    %c0_344 = arith.constant 0 : index
    %501 = memref.load %arg1[%c2_343, %c0_344] : memref<3x8xi32, #tpu.memory_space<smem>>
    %502 = arith.index_cast %501 : i32 to index
    %c0_345 = arith.constant 0 : index
    %c0_346 = arith.constant 0 : index
    %503 = vector.load %arg7[%502, %c0_345, %c0_346] : memref<12x1x16xf32, #tpu.memory_space<vmem>>, vector<1x1x16xf32>
    %504 = vector.shape_cast %503 : vector<1x1x16xf32> to vector<1x16xf32>
    %505 = vector.extract_strided_slice %498 {offsets = [0, 0], sizes = [1, 16], strides = [1, 1]} : vector<8x16xf32> to vector<1x16xf32>
    %506 = arith.addf %504, %505 : vector<1x16xf32>
    %507 = arith.index_cast %501 : i32 to index
    %c0_347 = arith.constant 0 : index
    %c0_348 = arith.constant 0 : index
    %508 = vector.load %arg7[%507, %c0_347, %c0_348] : memref<12x1x16xf32, #tpu.memory_space<vmem>>, vector<1x1x16xf32>
    %509 = vector.shape_cast %508 : vector<1x1x16xf32> to vector<1x16xf32>
    %510 = vector.shape_cast %506 : vector<1x16xf32> to vector<1x1x16xf32>
    tpu.vector_store %arg7[%507, %c0_347, %c0_348], %510 {strides = array<i32>} : memref<12x1x16xf32, #tpu.memory_space<vmem>>, vector<1x1x16xf32>,
    %c2_349 = arith.constant 2 : index
    %c1_350 = arith.constant 1 : index
    %511 = memref.load %arg1[%c2_349, %c1_350] : memref<3x8xi32, #tpu.memory_space<smem>>
    %512 = arith.index_cast %511 : i32 to index
    %c0_351 = arith.constant 0 : index
    %c0_352 = arith.constant 0 : index
    %513 = vector.load %arg7[%512, %c0_351, %c0_352] : memref<12x1x16xf32, #tpu.memory_space<vmem>>, vector<1x1x16xf32>
    %514 = vector.shape_cast %513 : vector<1x1x16xf32> to vector<1x16xf32>
    %515 = vector.extract_strided_slice %498 {offsets = [1, 0], sizes = [1, 16], strides = [1, 1]} : vector<8x16xf32> to vector<1x16xf32>
    %516 = arith.addf %514, %515 : vector<1x16xf32>
    %517 = arith.index_cast %511 : i32 to index
    %c0_353 = arith.constant 0 : index
    %c0_354 = arith.constant 0 : index
    %518 = vector.load %arg7[%517, %c0_353, %c0_354] : memref<12x1x16xf32, #tpu.memory_space<vmem>>, vector<1x1x16xf32>
    %519 = vector.shape_cast %518 : vector<1x1x16xf32> to vector<1x16xf32>
    %520 = vector.shape_cast %516 : vector<1x16xf32> to vector<1x1x16xf32>
    tpu.vector_store %arg7[%517, %c0_353, %c0_354], %520 {strides = array<i32>} : memref<12x1x16xf32, #tpu.memory_space<vmem>>, vector<1x1x16xf32>,
    %c2_355 = arith.constant 2 : index
    %c2_356 = arith.constant 2 : index
    %521 = memref.load %arg1[%c2_355, %c2_356] : memref<3x8xi32, #tpu.memory_space<smem>>
    %522 = arith.index_cast %521 : i32 to index
    %c0_357 = arith.constant 0 : index
    %c0_358 = arith.constant 0 : index
    %523 = vector.load %arg7[%522, %c0_357, %c0_358] : memref<12x1x16xf32, #tpu.memory_space<vmem>>, vector<1x1x16xf32>
    %524 = vector.shape_cast %523 : vector<1x1x16xf32> to vector<1x16xf32>
    %525 = vector.extract_strided_slice %498 {offsets = [2, 0], sizes = [1, 16], strides = [1, 1]} : vector<8x16xf32> to vector<1x16xf32>
    %526 = arith.addf %524, %525 : vector<1x16xf32>
    %527 = arith.index_cast %521 : i32 to index
    %c0_359 = arith.constant 0 : index
    %c0_360 = arith.constant 0 : index
    %528 = vector.load %arg7[%527, %c0_359, %c0_360] : memref<12x1x16xf32, #tpu.memory_space<vmem>>, vector<1x1x16xf32>
    %529 = vector.shape_cast %528 : vector<1x1x16xf32> to vector<1x16xf32>
    %530 = vector.shape_cast %526 : vector<1x16xf32> to vector<1x1x16xf32>
    tpu.vector_store %arg7[%527, %c0_359, %c0_360], %530 {strides = array<i32>} : memref<12x1x16xf32, #tpu.memory_space<vmem>>, vector<1x1x16xf32>,
    %c2_361 = arith.constant 2 : index
    %c3_362 = arith.constant 3 : index
    %531 = memref.load %arg1[%c2_361, %c3_362] : memref<3x8xi32, #tpu.memory_space<smem>>
    %532 = arith.index_cast %531 : i32 to index
    %c0_363 = arith.constant 0 : index
    %c0_364 = arith.constant 0 : index
    %533 = vector.load %arg7[%532, %c0_363, %c0_364] : memref<12x1x16xf32, #tpu.memory_space<vmem>>, vector<1x1x16xf32>
    %534 = vector.shape_cast %533 : vector<1x1x16xf32> to vector<1x16xf32>
    %535 = vector.extract_strided_slice %498 {offsets = [3, 0], sizes = [1, 16], strides = [1, 1]} : vector<8x16xf32> to vector<1x16xf32>
    %536 = arith.addf %534, %535 : vector<1x16xf32>
    %537 = arith.index_cast %531 : i32 to index
    %c0_365 = arith.constant 0 : index
    %c0_366 = arith.constant 0 : index
    %538 = vector.load %arg7[%537, %c0_365, %c0_366] : memref<12x1x16xf32, #tpu.memory_space<vmem>>, vector<1x1x16xf32>
    %539 = vector.shape_cast %538 : vector<1x1x16xf32> to vector<1x16xf32>
    %540 = vector.shape_cast %536 : vector<1x16xf32> to vector<1x1x16xf32>
    tpu.vector_store %arg7[%537, %c0_365, %c0_366], %540 {strides = array<i32>} : memref<12x1x16xf32, #tpu.memory_space<vmem>>, vector<1x1x16xf32>,
    %c2_367 = arith.constant 2 : index
    %c4_368 = arith.constant 4 : index
    %541 = memref.load %arg1[%c2_367, %c4_368] : memref<3x8xi32, #tpu.memory_space<smem>>
    %542 = arith.index_cast %541 : i32 to index
    %c0_369 = arith.constant 0 : index
    %c0_370 = arith.constant 0 : index
    %543 = vector.load %arg7[%542, %c0_369, %c0_370] : memref<12x1x16xf32, #tpu.memory_space<vmem>>, vector<1x1x16xf32>
    %544 = vector.shape_cast %543 : vector<1x1x16xf32> to vector<1x16xf32>
    %545 = vector.extract_strided_slice %498 {offsets = [4, 0], sizes = [1, 16], strides = [1, 1]} : vector<8x16xf32> to vector<1x16xf32>
    %546 = arith.addf %544, %545 : vector<1x16xf32>
    %547 = arith.index_cast %541 : i32 to index
    %c0_371 = arith.constant 0 : index
    %c0_372 = arith.constant 0 : index
    %548 = vector.load %arg7[%547, %c0_371, %c0_372] : memref<12x1x16xf32, #tpu.memory_space<vmem>>, vector<1x1x16xf32>
    %549 = vector.shape_cast %548 : vector<1x1x16xf32> to vector<1x16xf32>
    %550 = vector.shape_cast %546 : vector<1x16xf32> to vector<1x1x16xf32>
    tpu.vector_store %arg7[%547, %c0_371, %c0_372], %550 {strides = array<i32>} : memref<12x1x16xf32, #tpu.memory_space<vmem>>, vector<1x1x16xf32>,
    %c2_373 = arith.constant 2 : index
    %c5_374 = arith.constant 5 : index
    %551 = memref.load %arg1[%c2_373, %c5_374] : memref<3x8xi32, #tpu.memory_space<smem>>
    %552 = arith.index_cast %551 : i32 to index
    %c0_375 = arith.constant 0 : index
    %c0_376 = arith.constant 0 : index
    %553 = vector.load %arg7[%552, %c0_375, %c0_376] : memref<12x1x16xf32, #tpu.memory_space<vmem>>, vector<1x1x16xf32>
    %554 = vector.shape_cast %553 : vector<1x1x16xf32> to vector<1x16xf32>
    %555 = vector.extract_strided_slice %498 {offsets = [5, 0], sizes = [1, 16], strides = [1, 1]} : vector<8x16xf32> to vector<1x16xf32>
    %556 = arith.addf %554, %555 : vector<1x16xf32>
    %557 = arith.index_cast %551 : i32 to index
    %c0_377 = arith.constant 0 : index
    %c0_378 = arith.constant 0 : index
    %558 = vector.load %arg7[%557, %c0_377, %c0_378] : memref<12x1x16xf32, #tpu.memory_space<vmem>>, vector<1x1x16xf32>
    %559 = vector.shape_cast %558 : vector<1x1x16xf32> to vector<1x16xf32>
    %560 = vector.shape_cast %556 : vector<1x16xf32> to vector<1x1x16xf32>
    tpu.vector_store %arg7[%557, %c0_377, %c0_378], %560 {strides = array<i32>} : memref<12x1x16xf32, #tpu.memory_space<vmem>>, vector<1x1x16xf32>,
    %c2_379 = arith.constant 2 : index
    %c6_380 = arith.constant 6 : index
    %561 = memref.load %arg1[%c2_379, %c6_380] : memref<3x8xi32, #tpu.memory_space<smem>>
    %562 = arith.index_cast %561 : i32 to index
    %c0_381 = arith.constant 0 : index
    %c0_382 = arith.constant 0 : index
    %563 = vector.load %arg7[%562, %c0_381, %c0_382] : memref<12x1x16xf32, #tpu.memory_space<vmem>>, vector<1x1x16xf32>
    %564 = vector.shape_cast %563 : vector<1x1x16xf32> to vector<1x16xf32>
    %565 = vector.extract_strided_slice %498 {offsets = [6, 0], sizes = [1, 16], strides = [1, 1]} : vector<8x16xf32> to vector<1x16xf32>
    %566 = arith.addf %564, %565 : vector<1x16xf32>
    %567 = arith.index_cast %561 : i32 to index
    %c0_383 = arith.constant 0 : index
    %c0_384 = arith.constant 0 : index
    %568 = vector.load %arg7[%567, %c0_383, %c0_384] : memref<12x1x16xf32, #tpu.memory_space<vmem>>, vector<1x1x16xf32>
    %569 = vector.shape_cast %568 : vector<1x1x16xf32> to vector<1x16xf32>
    %570 = vector.shape_cast %566 : vector<1x16xf32> to vector<1x1x16xf32>
    tpu.vector_store %arg7[%567, %c0_383, %c0_384], %570 {strides = array<i32>} : memref<12x1x16xf32, #tpu.memory_space<vmem>>, vector<1x1x16xf32>,
    %c2_385 = arith.constant 2 : index
    %c7_386 = arith.constant 7 : index
    %571 = memref.load %arg1[%c2_385, %c7_386] : memref<3x8xi32, #tpu.memory_space<smem>>
    %572 = arith.index_cast %571 : i32 to index
    %c0_387 = arith.constant 0 : index
    %c0_388 = arith.constant 0 : index
    %573 = vector.load %arg7[%572, %c0_387, %c0_388] : memref<12x1x16xf32, #tpu.memory_space<vmem>>, vector<1x1x16xf32>
    %574 = vector.shape_cast %573 : vector<1x1x16xf32> to vector<1x16xf32>
    %575 = vector.extract_strided_slice %498 {offsets = [7, 0], sizes = [1, 16], strides = [1, 1]} : vector<8x16xf32> to vector<1x16xf32>
    %576 = arith.addf %574, %575 : vector<1x16xf32>
    %577 = arith.index_cast %571 : i32 to index
    %c0_389 = arith.constant 0 : index
    %c0_390 = arith.constant 0 : index
    %578 = vector.load %arg7[%577, %c0_389, %c0_390] : memref<12x1x16xf32, #tpu.memory_space<vmem>>, vector<1x1x16xf32>
    %579 = vector.shape_cast %578 : vector<1x1x16xf32> to vector<1x16xf32>
    %580 = vector.shape_cast %576 : vector<1x16xf32> to vector<1x1x16xf32>
    tpu.vector_store %arg7[%577, %c0_389, %c0_390], %580 {strides = array<i32>} : memref<12x1x16xf32, #tpu.memory_space<vmem>>, vector<1x1x16xf32>,
    %c0_391 = arith.constant 0 : index
    %c0_392 = arith.constant 0 : index
    %c0_393 = arith.constant 0 : index
    %581 = vector.load %arg7[%c0_391, %c0_392, %c0_393] : memref<12x1x16xf32, #tpu.memory_space<vmem>>, vector<1x1x16xf32>
    %582 = vector.shape_cast %581 : vector<1x1x16xf32> to vector<1x16xf32>
    %c1_394 = arith.constant 1 : index
    %c0_395 = arith.constant 0 : index
    %c0_396 = arith.constant 0 : index
    %583 = vector.load %arg7[%c1_394, %c0_395, %c0_396] : memref<12x1x16xf32, #tpu.memory_space<vmem>>, vector<1x1x16xf32>
    %584 = vector.shape_cast %583 : vector<1x1x16xf32> to vector<1x16xf32>
    %c2_397 = arith.constant 2 : index
    %c0_398 = arith.constant 0 : index
    %c0_399 = arith.constant 0 : index
    %585 = vector.load %arg7[%c2_397, %c0_398, %c0_399] : memref<12x1x16xf32, #tpu.memory_space<vmem>>, vector<1x1x16xf32>
    %586 = vector.shape_cast %585 : vector<1x1x16xf32> to vector<1x16xf32>
    %c3_400 = arith.constant 3 : index
    %c0_401 = arith.constant 0 : index
    %c0_402 = arith.constant 0 : index
    %587 = vector.load %arg7[%c3_400, %c0_401, %c0_402] : memref<12x1x16xf32, #tpu.memory_space<vmem>>, vector<1x1x16xf32>
    %588 = vector.shape_cast %587 : vector<1x1x16xf32> to vector<1x16xf32>
    %c4_403 = arith.constant 4 : index
    %c0_404 = arith.constant 0 : index
    %c0_405 = arith.constant 0 : index
    %589 = vector.load %arg7[%c4_403, %c0_404, %c0_405] : memref<12x1x16xf32, #tpu.memory_space<vmem>>, vector<1x1x16xf32>
    %590 = vector.shape_cast %589 : vector<1x1x16xf32> to vector<1x16xf32>
    %c5_406 = arith.constant 5 : index
    %c0_407 = arith.constant 0 : index
    %c0_408 = arith.constant 0 : index
    %591 = vector.load %arg7[%c5_406, %c0_407, %c0_408] : memref<12x1x16xf32, #tpu.memory_space<vmem>>, vector<1x1x16xf32>
    %592 = vector.shape_cast %591 : vector<1x1x16xf32> to vector<1x16xf32>
    %c6_409 = arith.constant 6 : index
    %c0_410 = arith.constant 0 : index
    %c0_411 = arith.constant 0 : index
    %593 = vector.load %arg7[%c6_409, %c0_410, %c0_411] : memref<12x1x16xf32, #tpu.memory_space<vmem>>, vector<1x1x16xf32>
    %594 = vector.shape_cast %593 : vector<1x1x16xf32> to vector<1x16xf32>
    %c7_412 = arith.constant 7 : index
    %c0_413 = arith.constant 0 : index
    %c0_414 = arith.constant 0 : index
    %595 = vector.load %arg7[%c7_412, %c0_413, %c0_414] : memref<12x1x16xf32, #tpu.memory_space<vmem>>, vector<1x1x16xf32>
    %596 = vector.shape_cast %595 : vector<1x1x16xf32> to vector<1x16xf32>
    %c8_415 = arith.constant 8 : index
    %c0_416 = arith.constant 0 : index
    %c0_417 = arith.constant 0 : index
    %597 = vector.load %arg7[%c8_415, %c0_416, %c0_417] : memref<12x1x16xf32, #tpu.memory_space<vmem>>, vector<1x1x16xf32>
    %598 = vector.shape_cast %597 : vector<1x1x16xf32> to vector<1x16xf32>
    %c9_418 = arith.constant 9 : index
    %c0_419 = arith.constant 0 : index
    %c0_420 = arith.constant 0 : index
    %599 = vector.load %arg7[%c9_418, %c0_419, %c0_420] : memref<12x1x16xf32, #tpu.memory_space<vmem>>, vector<1x1x16xf32>
    %600 = vector.shape_cast %599 : vector<1x1x16xf32> to vector<1x16xf32>
    %c10_421 = arith.constant 10 : index
    %c0_422 = arith.constant 0 : index
    %c0_423 = arith.constant 0 : index
    %601 = vector.load %arg7[%c10_421, %c0_422, %c0_423] : memref<12x1x16xf32, #tpu.memory_space<vmem>>, vector<1x1x16xf32>
    %602 = vector.shape_cast %601 : vector<1x1x16xf32> to vector<1x16xf32>
    %c11_424 = arith.constant 11 : index
    %c0_425 = arith.constant 0 : index
    %c0_426 = arith.constant 0 : index
    %603 = vector.load %arg7[%c11_424, %c0_425, %c0_426] : memref<12x1x16xf32, #tpu.memory_space<vmem>>, vector<1x1x16xf32>
    %604 = vector.shape_cast %603 : vector<1x1x16xf32> to vector<1x16xf32>
    %605 = tpu.concatenate %582, %584, %586, %588, %590, %592, %594, %596, %598, %600, %602, %604 in 0 : vector<1x16xf32>, vector<1x16xf32>, vector<1x16xf32>, vector<1x16xf32>, vector<1x16xf32>, vector<1x16xf32>, vector<1x16xf32>, vector<1x16xf32>, vector<1x16xf32>, vector<1x16xf32>, vector<1x16xf32>, vector<1x16xf32> -> vector<12x16xf32>
    %606 = vector.broadcast %5 : vector<1x16xf32> to vector<12x16xf32>
    %607 = arith.mulf %606, %12 : vector<12x16xf32>
    %608 = arith.addf %607, %605 : vector<12x16xf32>
    %609 = vector.broadcast %6 : vector<1x16xf32> to vector<12x16xf32>
    %610 = arith.addf %608, %609 : vector<12x16xf32>
    %cst_427 = arith.constant 0.000000e+00 : f32
    %611 = vector.broadcast %cst_427 : f32 to vector<12x16xf32>
    %612 = arith.subf %611, %610 : vector<12x16xf32>
    %613 = math.exp %612 : vector<12x16xf32>
    %cst_428 = arith.constant 1.000000e+00 : f32
    %614 = vector.broadcast %cst_428 : f32 to vector<12x16xf32>
    %615 = arith.addf %614, %613 : vector<12x16xf32>
    %616 = tpu.reciprocal %615 {approx = true} : vector<12x16xf32> -> vector<12x16xf32>
    %c24 = arith.constant 24 : index
    %c0_429 = arith.constant 0 : index
    %617 = vector.load %arg5[%c24, %c0_429] : memref<36x16xf32, #tpu.memory_space<vmem>>, vector<12x16xf32>
    tpu.vector_store %arg5[%c24, %c0_429], %616 {strides = array<i32>} : memref<36x16xf32, #tpu.memory_space<vmem>>, vector<12x16xf32>,
    return
  }
  func.func @transform_0(%arg0: i32, %arg1: memref<3x8xi32, #tpu.memory_space<smem>>) -> (i32, i32) {
    %c0_i32 = arith.constant 0 : i32
    %c0_i32_0 = arith.constant 0 : i32
    %c0_i32_1 = arith.constant 0 : i32
    return %c0_i32, %c0_i32_0 : i32, i32
  }
  func.func @transform_1(%arg0: i32, %arg1: memref<3x8xi32, #tpu.memory_space<smem>>) -> (i32, i32) {
    %c0_i32 = arith.constant 0 : i32
    %c0_i32_0 = arith.constant 0 : i32
    %c0_i32_1 = arith.constant 0 : i32
    return %c0_i32, %c0_i32_0 : i32, i32
  }
  func.func @transform_2(%arg0: i32, %arg1: memref<3x8xi32, #tpu.memory_space<smem>>) -> (i32, i32) {
    %c0_i32 = arith.constant 0 : i32
    %c0_i32_0 = arith.constant 0 : i32
    %c0_i32_1 = arith.constant 0 : i32
    return %c0_i32, %c0_i32_0 : i32, i32
  }
  func.func @transform_3(%arg0: i32, %arg1: memref<3x8xi32, #tpu.memory_space<smem>>) -> (i32, i32) {
    %c0_i32 = arith.constant 0 : i32
    %c0_i32_0 = arith.constant 0 : i32
    %c0_i32_1 = arith.constant 0 : i32
    return %c0_i32, %c0_i32_0 : i32, i32
  }
}

</mosaic_0001>

<llo_original>
// kernel: tpu_custom_call.1
$region0: #{tpu_custom_call.1}
  #allocation0 [shape = 'u32[]', space=smem, size = 0x4, offset = 0x4, fixed_abs, tag = 'smem constant byte address 0x4 - core index']
  #allocation1 [shape = 'u32[72,128]{1,0:T(1,128)}', space=vmem, size = 0x9000, scoped, tag = 'internal scratch']
  #allocation2 [shape = 'f32[12,1,16]{2,1,0:T(1,128)}', space=vmem, size = 0x1800, scoped, tag = 'scratch operand']
  #allocation3 [shape = 'f32[12,1,16]{2,1,0:T(1,128)}', space=vmem, size = 0x1800, scoped, tag = 'scratch operand']
  #allocation4 [shape = 's32[1]{0}', space=sflag, size = 0x4, scoped, tag = 'scoped memory for tpu_custom_call.1']
  #allocation5 [shape = 'u8[2048]{0}', space=smem, size = 0x800, scoped, tag = 'prefetched SMEM operand 0']
  %s0 = inlined_call_operand.hbm [shape: s32[3,8], index: 0, kind: input, shape index: {}]
  %s1 = inlined_call_operand.hbm [shape: f32[12,16], index: 1, kind: input, shape index: {}]
  %s2 = inlined_call_operand.hbm [shape: f32[16,16], index: 2, kind: input, shape index: {}]
  %s3 = inlined_call_operand.hbm [shape: f32[56,128], index: 3, kind: input, shape index: {}]
  %s4 = inlined_call_operand.vmem [shape: f32[36,16], index: 4, kind: output, shape index: {}]
  %s5 = sld [smem:[#allocation0]]
  $region34: #{tpu_custom_call.1} parent=0
    _
  %s7 = ssub.s32 1, %s5
  %s8 = scalar_select 0, %s7, %s5
  %s10 = sshll.u32 %s0, 4
  %s11 = int_to_ptr.hbm [resolvable:$true] %s10
  %13 = dma.hbm_to_smem %s11, 64, [#allocation5], [#allocation4]
  %15 = dma.done [#allocation4], 64
  %16 = sfence
  $region1: #{tpu_custom_call.1} parent=0
    #allocation6 [shape = 'u8[8192]{0}', space=vmem, size = 0x2000, scoped, tag = 'input window, operand 1, single buffered']
    #allocation7 [shape = 's32[1]{0}', space=sflag, size = 0x4, scoped, tag = 'scoped memory for tpu_custom_call.1']
    #allocation8 [shape = 'u8[8192]{0}', space=vmem, size = 0x2000, scoped, tag = 'input window, operand 2, single buffered']
    #allocation9 [shape = 's32[1]{0}', space=sflag, size = 0x4, scoped, tag = 'scoped memory for tpu_custom_call.1']
    #allocation10 [shape = 'u8[28672]{0}', space=vmem, size = 0x7000, scoped, tag = 'input window, operand 3, single buffered']
    %17 = vsyncpa [#allocation7], 0
    %18 = vsyncpa [#allocation9], 0
    // Predicated region
    $region2: #{tpu_custom_call.1} parent=1 // pred_check
      _
    $region3: #{tpu_custom_call.1} parent=1 // pred_check_branch
      %20 = sbr.rel (0) target = $region5
    $region4: #{tpu_custom_call.1} parent=1 // pred_region
      %22 = vsyncadd [#allocation7], 0
      %s23 = sshll.u32 %s1, 4
      %s24 = int_to_ptr.hbm [resolvable:$true] %s23
      %s25 = sshll.u32 [#allocation6], 4
      %s26 = int_to_ptr.vmem [resolvable:$true] %s25
      %31 = dma.hbm_to_vmem [thread:$0]  %s24, 256, %s26, [#allocation7], 128, 128, 8
    $region5: #{tpu_custom_call.1} parent=1 // pred_fallthru
      _
    // Predicated region
    $region6: #{tpu_custom_call.1} parent=1 // pred_check
      _
    $region7: #{tpu_custom_call.1} parent=1 // pred_check_branch
      %33 = sbr.rel (0) target = $region9
    $region8: #{tpu_custom_call.1} parent=1 // pred_region
      %35 = vsyncadd [#allocation9], 0
      %s36 = sshll.u32 %s2, 4
      %s37 = int_to_ptr.hbm [resolvable:$true] %s36
      %s38 = sshll.u32 [#allocation8], 4
      %s39 = int_to_ptr.vmem [resolvable:$true] %s38
      %44 = dma.hbm_to_vmem [thread:$0]  %s37, 256, %s39, [#allocation9], 128, 128, 8
    $region9: #{tpu_custom_call.1} parent=1 // pred_fallthru
      _
    // Predicated region
    $region10: #{tpu_custom_call.1} parent=1 // pred_check
      _
    $region11: #{tpu_custom_call.1} parent=1 // pred_check_branch
      %46 = sbr.rel (0) target = $region13
    $region12: #{tpu_custom_call.1} parent=1 // pred_region
      %48 = vsyncadd [#allocation9], 0
      %s49 = sshll.u32 %s3, 4
      %s50 = int_to_ptr.hbm [resolvable:$true] %s49
      %s51 = sshll.u32 [#allocation10], 4
      %s52 = int_to_ptr.vmem [resolvable:$true] %s51
      %57 = dma.hbm_to_vmem [thread:$0]  %s50, 896, %s52, [#allocation9], 128, 128, 8
    $region13: #{tpu_custom_call.1} parent=1 // pred_fallthru
      _
    // Predicated region
    $region14: #{tpu_custom_call.1} parent=1 // pred_check
      _
    $region15: #{tpu_custom_call.1} parent=1 // pred_check_branch
      %59 = sbr.rel (0) target = $region17
    $region16: #{tpu_custom_call.1} parent=1 // pred_region
      %61 = dma.done [#allocation7], 256
    $region17: #{tpu_custom_call.1} parent=1 // pred_fallthru
      _
    // Predicated region
    $region18: #{tpu_custom_call.1} parent=1 // pred_check
      _
    $region19: #{tpu_custom_call.1} parent=1 // pred_check_branch
      %63 = sbr.rel (0) target = $region21
    $region20: #{tpu_custom_call.1} parent=1 // pred_region
      %65 = dma.done [#allocation9], 256
    $region21: #{tpu_custom_call.1} parent=1 // pred_fallthru
      _
    // Predicated region
    $region22: #{tpu_custom_call.1} parent=1 // pred_check
      _
    $region23: #{tpu_custom_call.1} parent=1 // pred_check_branch
      %67 = sbr.rel (0) target = $region25
    $region24: #{tpu_custom_call.1} parent=1 // pred_region
      %69 = dma.done [#allocation9], 896
    $region25: #{tpu_custom_call.1} parent=1 // pred_fallthru
      _
    %v70 = vld [vmem:[#allocation10] sm:$0x1]
    %v71 = vld [vmem:[#allocation10 + $0x1] sm:$0x1]
    %v72 = vld [vmem:[#allocation10 + $0x2] sm:$0x1]
    %v73 = vld [vmem:[#allocation10 + $0x3] sm:$0x1]
    %v74 = vld [vmem:[#allocation10 + $0x4] sm:$0x1]
    %v75 = vld [vmem:[#allocation10 + $0x5] sm:$0x1]
    %v76 = vld [vmem:[#allocation10 + $0x6] sm:$0x1]
    %v77 = vld [vmem:[#allocation10 + $0x7] sm:$0xff]
    %v78 = vld [vmem:[#allocation10 + $0xf] sm:$0xff]
    %v79 = vld [vmem:[#allocation10 + $0x17] sm:$0xff]
    %v80 = vld [vmem:[#allocation10 + $0x1f] sm:$0xff]
    %v81 = vld [vmem:[#allocation10 + $0x27] sm:$0xff]
    %v82 = vld [vmem:[#allocation10 + $0x2f] sm:$0xff]
    %v83 = vld [vmem:[#allocation6] sm:$0xff]
    %v84 = vld [vmem:[#allocation6 + $0x8] sm:$0xf]
    %v85 = vld [vmem:[#allocation8] sm:$0xff]
    %v86 = vld [vmem:[#allocation8 + $0x8] sm:$0xff]
    %vm87 = vcmask 130048
    %v89 = vsel %vm87, %v83, 0
    %v92 = vsel %vm87, %v84, 0
    %94 = vmatpush.msra.mxu0 0.0
    %95 = vmatpush.msra.mxu0 0.0
    %96 = vmatpush.msra.mxu0 0.0
    %97 = vmatpush.msra.mxu0 0.0
    %98 = vmatpush.msra.mxu0 0.0
    %99 = vmatpush.msra.mxu0 0.0
    %100 = vmatpush.msra.mxu0 0.0
    %101 = vmatpush.msra.mxu0 0.0
    %102 = vmatpush.msra.mxu0 0.0
    %103 = vmatpush.msra.mxu0 0.0
    %104 = vmatpush.msra.mxu0 0.0
    %105 = vmatpush.msra.mxu0 0.0
    %106 = vmatpush.msra.mxu0 0.0
    %107 = vmatpush.msra.mxu0 0.0
    %108 = vmatpush.msra.mxu0 %v86
    %109 = vmatpush.msra.mxu0 %v85
    %110 = vmatmul.f32.gmra.mxu0 %v89
    %v111 = vpop.f32.mrf.mxu0
    %v112 = vadd.f32 0.0, %v111
    %113 = vmatmul.f32.gmra.mxu0 %v92
    %v114 = vpop.f32.mrf.mxu0
    %v115 = vadd.f32 0.0, %v114
    %116 = vdwg.mxu0
    %vm117 = vcmask 122880
    %118 = vst.msk [vmem:[#allocation2] sm:$0x1] %vm117, %v112
    %s119 = scalar_lea.vmem [#allocation2], 1
    %vm120 = vcmask 123905
    %121 = vst.msk [vmem:[%s119 - $0x1] sm:$0x2] %vm120, %v112
    %s122 = scalar_lea.vmem [#allocation2], 2
    %vm123 = vcmask 124930
    %124 = vst.msk [vmem:[%s122 - $0x2] sm:$0x4] %vm123, %v112
    %s125 = scalar_lea.vmem [#allocation2], 3
    %vm126 = vcmask 125955
    %127 = vst.msk [vmem:[%s125 - $0x3] sm:$0x8] %vm126, %v112
    %s128 = scalar_lea.vmem [#allocation2], 4
    %vm129 = vcmask 126980
    %130 = vst.msk [vmem:[%s128 - $0x4] sm:$0x10] %vm129, %v112
    %s131 = scalar_lea.vmem [#allocation2], 5
    %vm132 = vcmask 128005
    %133 = vst.msk [vmem:[%s131 - $0x5] sm:$0x20] %vm132, %v112
    %s134 = scalar_lea.vmem [#allocation2], 6
    %vm135 = vcmask 129030
    %136 = vst.msk [vmem:[%s134 - $0x6] sm:$0x40] %vm135, %v112
    %s137 = scalar_lea.vmem [#allocation2], 7
    %vm138 = vcmask 130055
    %139 = vst.msk [vmem:[%s137 - $0x7] sm:$0x80] %vm138, %v112
    %s140 = scalar_lea.vmem [#allocation2], 8
    %141 = vst.msk [vmem:[%s140] sm:$0x1] %vm117, %v115
    %s142 = scalar_lea.vmem [#allocation2], 9
    %143 = vst.msk [vmem:[%s142 - $0x1] sm:$0x2] %vm120, %v115
    %s144 = scalar_lea.vmem [#allocation2], 10
    %145 = vst.msk [vmem:[%s144 - $0x2] sm:$0x4] %vm123, %v115
    %s146 = scalar_lea.vmem [#allocation2], 11
    %147 = vst.msk [vmem:[%s146 - $0x3] sm:$0x8] %vm126, %v115
    %s148 = sld [smem:[#allocation5]]
    %s149 = scalar_lea.vmem [#allocation2], %s148
    %v150 = vld [vmem:[%s149] sm:$0x1]
    %s151 = sld [smem:[#allocation5 + $0x1]]
    %s152 = scalar_lea.vmem [#allocation2], %s151
    %v153 = vld [vmem:[%s152] sm:$0x1]
    %s154 = sld [smem:[#allocation5 + $0x2]]
    %s155 = scalar_lea.vmem [#allocation2], %s154
    %v156 = vld [vmem:[%s155] sm:$0x1]
    %s157 = sld [smem:[#allocation5 + $0x3]]
    %s158 = scalar_lea.vmem [#allocation2], %s157
    %v159 = vld [vmem:[%s158] sm:$0x1]
    %s160 = sld [smem:[#allocation5 + $0x4]]
    %s161 = scalar_lea.vmem [#allocation2], %s160
    %v162 = vld [vmem:[%s161] sm:$0x1]
    %s163 = sld [smem:[#allocation5 + $0x5]]
    %s164 = scalar_lea.vmem [#allocation2], %s163
    %v165 = vld [vmem:[%s164] sm:$0x1]
    %s166 = sld [smem:[#allocation5 + $0x6]]
    %s167 = scalar_lea.vmem [#allocation2], %s166
    %v168 = vld [vmem:[%s167] sm:$0x1]
    %s169 = sld [smem:[#allocation5 + $0x7]]
    %s170 = scalar_lea.vmem [#allocation2], %s169
    %v171 = vld [vmem:[%s170] sm:$0x1]
    %v173 = vperm.slane %v153, 0
    %v176 = vperm.slane %v156, 0
    %v179 = vperm.slane %v159, 0
    %v182 = vperm.slane %v162, 0
    %v185 = vperm.slane %v165, 0
    %v188 = vperm.slane %v168, 0
    %v191 = vperm.slane %v171, 0
    %vm193 = vcmask 1040384
    %v194 = vsel %vm193, %v150, %v173
    %vm195 = vcmask 1041408
    %v196 = vsel %vm195, %v194, %v176
    %vm197 = vcmask 1042432
    %v198 = vsel %vm197, %v196, %v179
    %vm199 = vcmask 1043456
    %v200 = vsel %vm199, %v198, %v182
    %vm201 = vcmask 1044480
    %v202 = vsel %vm201, %v200, %v185
    %vm203 = vcmask 1045504
    %v204 = vsel %vm203, %v202, %v188
    %vm205 = vcmask 1046528
    %v206 = vsel %vm205, %v204, %v191
    %s207 = sld [smem:[#allocation5 + $0x80]]
    %s208 = scalar_lea.vmem [#allocation2], %s207
    %v209 = vld [vmem:[%s208] sm:$0x1]
    %s210 = sld [smem:[#allocation5 + $0x81]]
    %s211 = scalar_lea.vmem [#allocation2], %s210
    %v212 = vld [vmem:[%s211] sm:$0x1]
    %s213 = sld [smem:[#allocation5 + $0x82]]
    %s214 = scalar_lea.vmem [#allocation2], %s213
    %v215 = vld [vmem:[%s214] sm:$0x1]
    %s216 = sld [smem:[#allocation5 + $0x83]]
    %s217 = scalar_lea.vmem [#allocation2], %s216
    %v218 = vld [vmem:[%s217] sm:$0x1]
    %s219 = sld [smem:[#allocation5 + $0x84]]
    %s220 = scalar_lea.vmem [#allocation2], %s219
    %v221 = vld [vmem:[%s220] sm:$0x1]
    %s222 = sld [smem:[#allocation5 + $0x85]]
    %s223 = scalar_lea.vmem [#allocation2], %s222
    %v224 = vld [vmem:[%s223] sm:$0x1]
    %s225 = sld [smem:[#allocation5 + $0x86]]
    %s226 = scalar_lea.vmem [#allocation2], %s225
    %v227 = vld [vmem:[%s226] sm:$0x1]
    %s228 = sld [smem:[#allocation5 + $0x87]]
    %s229 = scalar_lea.vmem [#allocation2], %s228
    %v230 = vld [vmem:[%s229] sm:$0x1]
    %v232 = vperm.slane %v212, 0
    %v235 = vperm.slane %v215, 0
    %v238 = vperm.slane %v218, 0
    %v241 = vperm.slane %v221, 0
    %v244 = vperm.slane %v224, 0
    %v247 = vperm.slane %v227, 0
    %v250 = vperm.slane %v230, 0
    %v252 = vsel %vm193, %v209, %v232
    %v253 = vsel %vm195, %v252, %v235
    %v254 = vsel %vm197, %v253, %v238
    %v255 = vsel %vm199, %v254, %v241
    %v256 = vsel %vm201, %v255, %v244
    %v257 = vsel %vm203, %v256, %v247
    %v258 = vsel %vm205, %v257, %v250
    %s259 = sld [smem:[#allocation5 + $0x100]]
    %s260 = scalar_lea.vmem [#allocation2], %s259
    %v261 = vld [vmem:[%s260] sm:$0x1]
    %s262 = sld [smem:[#allocation5 + $0x101]]
    %s263 = scalar_lea.vmem [#allocation2], %s262
    %v264 = vld [vmem:[%s263] sm:$0x1]
    %s265 = sld [smem:[#allocation5 + $0x102]]
    %s266 = scalar_lea.vmem [#allocation2], %s265
    %v267 = vld [vmem:[%s266] sm:$0x1]
    %s268 = sld [smem:[#allocation5 + $0x103]]
    %s269 = scalar_lea.vmem [#allocation2], %s268
    %v270 = vld [vmem:[%s269] sm:$0x1]
    %s271 = sld [smem:[#allocation5 + $0x104]]
    %s272 = scalar_lea.vmem [#allocation2], %s271
    %v273 = vld [vmem:[%s272] sm:$0x1]
    %s274 = sld [smem:[#allocation5 + $0x105]]
    %s275 = scalar_lea.vmem [#allocation2], %s274
    %v276 = vld [vmem:[%s275] sm:$0x1]
    %s277 = sld [smem:[#allocation5 + $0x106]]
    %s278 = scalar_lea.vmem [#allocation2], %s277
    %v279 = vld [vmem:[%s278] sm:$0x1]
    %s280 = sld [smem:[#allocation5 + $0x107]]
    %s281 = scalar_lea.vmem [#allocation2], %s280
    %v282 = vld [vmem:[%s281] sm:$0x1]
    %v284 = vperm.slane %v264, 0
    %v287 = vperm.slane %v267, 0
    %v290 = vperm.slane %v270, 0
    %v293 = vperm.slane %v273, 0
    %v296 = vperm.slane %v276, 0
    %v299 = vperm.slane %v279, 0
    %v302 = vperm.slane %v282, 0
    %v304 = vsel %vm193, %v261, %v284
    %v305 = vsel %vm195, %v304, %v287
    %v306 = vsel %vm197, %v305, %v290
    %v307 = vsel %vm199, %v306, %v293
    %v308 = vsel %vm201, %v307, %v296
    %v309 = vsel %vm203, %v308, %v299
    %v310 = vsel %vm205, %v309, %v302
    %312 = vrot.lane.b32.xlu0 %v206, 120
    %v313 = vpop.permute.xlu0 %312
    %315 = vrot.lane.b32.xlu0 %v258, 120
    %v316 = vpop.permute.xlu0 %315
    %318 = vrot.lane.b32.xlu0 %v310, 120
    %v319 = vpop.permute.xlu0 %318
    %vm320 = vcmask 64512
    %v321 = vsel %vm320, %v258, 0
    %v323 = vsel %vm320, %v316, 0
    %325 = vmatpush.msra.mxu0 0.0
    %326 = vmatpush.msra.mxu0 0.0
    %327 = vmatpush.msra.mxu0 0.0
    %328 = vmatpush.msra.mxu0 0.0
    %329 = vmatpush.msra.mxu0 0.0
    %330 = vmatpush.msra.mxu0 0.0
    %331 = vmatpush.msra.mxu0 0.0
    %332 = vmatpush.msra.mxu0 0.0
    %333 = vmatpush.msra.mxu0 0.0
    %334 = vmatpush.msra.mxu0 0.0
    %335 = vmatpush.msra.mxu0 0.0
    %336 = vmatpush.msra.mxu0 0.0
    %337 = vmatpush.msra.mxu0 0.0
    %338 = vmatpush.msra.mxu0 0.0
    %339 = vmatpush.msra.mxu0 0.0
    %340 = vmatpush.msra.mxu0 %v81
    %341 = vmatmul.f32.gmra.mxu0 %v321
    %v342 = vpop.f32.mrf.mxu0
    %v343 = vadd.f32 0.0, %v342
    %344 = vmatmul.f32.gmra.mxu0 %v323
    %v345 = vpop.f32.mrf.mxu0
    %v346 = vadd.f32 0.0, %v345
    %347 = vdwg.mxu0
    %v348 = vsel %vm320, %v206, 0
    %v350 = vsel %vm320, %v313, 0
    %352 = vmatpush.msra.mxu0 0.0
    %353 = vmatpush.msra.mxu0 0.0
    %354 = vmatpush.msra.mxu0 0.0
    %355 = vmatpush.msra.mxu0 0.0
    %356 = vmatpush.msra.mxu0 0.0
    %357 = vmatpush.msra.mxu0 0.0
    %358 = vmatpush.msra.mxu0 0.0
    %359 = vmatpush.msra.mxu0 0.0
    %360 = vmatpush.msra.mxu0 0.0
    %361 = vmatpush.msra.mxu0 0.0
    %362 = vmatpush.msra.mxu0 0.0
    %363 = vmatpush.msra.mxu0 0.0
    %364 = vmatpush.msra.mxu0 0.0
    %365 = vmatpush.msra.mxu0 0.0
    %366 = vmatpush.msra.mxu0 0.0
    %367 = vmatpush.msra.mxu0 %v80
    %368 = vmatmul.f32.gmra.mxu0 %v348
    %v369 = vpop.f32.mrf.mxu0
    %v370 = vadd.f32 %v343, %v369
    %371 = vmatmul.f32.gmra.mxu0 %v350
    %v372 = vpop.f32.mrf.mxu0
    %v373 = vadd.f32 %v346, %v372
    %374 = vdwg.mxu0
    %v375 = vsel %vm320, %v310, 0
    %v377 = vsel %vm320, %v319, 0
    %379 = vmatpush.msra.mxu0 0.0
    %380 = vmatpush.msra.mxu0 0.0
    %381 = vmatpush.msra.mxu0 0.0
    %382 = vmatpush.msra.mxu0 0.0
    %383 = vmatpush.msra.mxu0 0.0
    %384 = vmatpush.msra.mxu0 0.0
    %385 = vmatpush.msra.mxu0 0.0
    %386 = vmatpush.msra.mxu0 0.0
    %387 = vmatpush.msra.mxu0 0.0
    %388 = vmatpush.msra.mxu0 0.0
    %389 = vmatpush.msra.mxu0 0.0
    %390 = vmatpush.msra.mxu0 0.0
    %391 = vmatpush.msra.mxu0 0.0
    %392 = vmatpush.msra.mxu0 0.0
    %393 = vmatpush.msra.mxu0 0.0
    %394 = vmatpush.msra.mxu0 %v82
    %395 = vmatmul.f32.gmra.mxu0 %v375
    %v396 = vpop.f32.mrf.mxu0
    %v397 = vadd.f32 0.0, %v396
    %398 = vmatmul.f32.gmra.mxu0 %v377
    %v399 = vpop.f32.mrf.mxu0
    %v400 = vadd.f32 0.0, %v399
    %401 = vdwg.mxu0
    %v402 = vadd.f32 %v370, %v397
    %v403 = vadd.f32 %v373, %v400
    %v404 = vperm.slane %v70, 0
    %v405 = vadd.f32 %v402, %v404
    %v406 = vadd.f32 %v403, %v404
    %v407 = vmax.f32 %v405, 0.0
    %v408 = vmax.f32 %v406, 0.0
    %v409 = vperm.slane %v71, 0
    %v410 = vmul.f32 %v407, %v409
    %v411 = vmul.f32 %v408, %v409
    %412 = vadd.xlane.f32.xlu0 %v410
    %v413 = vpop.xlane.xlu0 %412
    %414 = vadd.xlane.f32.xlu0 %v411
    %v415 = vpop.xlane.xlu0 %414
    %v416 = vperm.slane %v72, 0
    %v417 = vadd.f32 %v413, %v416
    %v418 = vadd.f32 %v415, %v416
    %vm419 = vcmp.ge.f32.partialorder %v417, 0.0
    %vm420 = vcmp.ge.f32.partialorder %v418, 0.0
    %v421 = vmul.f32 %v417, 0.2
    %v422 = vmul.f32 %v418, 0.2
    %v423 = vsel %vm419, %v417, %v421
    %v424 = vsel %vm420, %v418, %v422
    %426 = vrot.lane.b32.xlu0 %v424, 1
    %v427 = vpop.permute.xlu0 %426
    %vm429 = vcmask 7168
    %v430 = vsel %vm429, %v423, %v427
    %vm431 = vcmask 15360
    %v432 = vsel %vm431, %v430, -inf
    %433 = vmax.xlane.f32.xlu0 %v432
    %v434 = vpop.xlane.xlu0 %433
    %v435 = vsub.f32 %v430, %v434
    %v436 = vmul.f32 %v435, 1.442695
    %v437 = vpow.pop %v436
    %v438 = vsel %vm431, %v437, 0.0
    %439 = vadd.xlane.f32.xlu0 %v438
    %v440 = vpop.xlane.xlu0 %439
    %v441 = vrcp.pop %v440
    %v442 = vmul.f32 %v437, %v441
    %443 = vmatpush.msra.mxu0 0.0
    %444 = vmatpush.msra.mxu0 0.0
    %445 = vmatpush.msra.mxu0 0.0
    %446 = vmatpush.msra.mxu0 0.0
    %447 = vmatpush.msra.mxu0 0.0
    %448 = vmatpush.msra.mxu0 0.0
    %449 = vmatpush.msra.mxu0 0.0
    %450 = vmatpush.msra.mxu0 0.0
    %451 = vmatpush.msra.mxu0 0.0
    %452 = vmatpush.msra.mxu0 0.0
    %453 = vmatpush.msra.mxu0 0.0
    %454 = vmatpush.msra.mxu0 0.0
    %455 = vmatpush.msra.mxu0 0.0
    %456 = vmatpush.msra.mxu0 0.0
    %457 = vmatpush.msra.mxu0 0.0
    %458 = vmatpush.msra.mxu0 %v78
    %459 = vmatmul.f32.gmra.mxu0 %v375
    %v460 = vpop.f32.mrf.mxu0
    %v461 = vadd.f32 0.0, %v460
    %462 = vmatmul.f32.gmra.mxu0 %v377
    %v463 = vpop.f32.mrf.mxu0
    %v464 = vadd.f32 0.0, %v463
    %465 = vmatmul.f32.gmra.mxu0 %v375
    %v466 = vpop.f32.mrf.mxu0
    %v467 = vadd.f32 0.0, %v466
    %468 = vmatmul.f32.gmra.mxu0 %v377
    %v469 = vpop.f32.mrf.mxu0
    %v470 = vadd.f32 0.0, %v469
    %471 = vmatmul.f32.gmra.mxu0 %v321
    %v472 = vpop.f32.mrf.mxu0
    %v473 = vadd.f32 0.0, %v472
    %474 = vmatmul.f32.gmra.mxu0 %v323
    %v475 = vpop.f32.mrf.mxu0
    %v476 = vadd.f32 0.0, %v475
    %477 = vdwg.mxu0
    %478 = vmatpush.msra.mxu0 0.0
    %479 = vmatpush.msra.mxu0 0.0
    %480 = vmatpush.msra.mxu0 0.0
    %481 = vmatpush.msra.mxu0 0.0
    %482 = vmatpush.msra.mxu0 0.0
    %483 = vmatpush.msra.mxu0 0.0
    %484 = vmatpush.msra.mxu0 0.0
    %485 = vmatpush.msra.mxu0 0.0
    %486 = vmatpush.msra.mxu0 0.0
    %487 = vmatpush.msra.mxu0 0.0
    %488 = vmatpush.msra.mxu0 0.0
    %489 = vmatpush.msra.mxu0 0.0
    %490 = vmatpush.msra.mxu0 0.0
    %491 = vmatpush.msra.mxu0 0.0
    %492 = vmatpush.msra.mxu0 0.0
    %493 = vmatpush.msra.mxu0 %v77
    %494 = vmatmul.f32.gmra.mxu0 %v321
    %v495 = vpop.f32.mrf.mxu0
    %v496 = vadd.f32 %v461, %v495
    %497 = vmatmul.f32.gmra.mxu0 %v323
    %v498 = vpop.f32.mrf.mxu0
    %v499 = vadd.f32 %v464, %v498
    %500 = vmatmul.f32.gmra.mxu0 %v348
    %v501 = vpop.f32.mrf.mxu0
    %v502 = vadd.f32 %v467, %v501
    %503 = vmatmul.f32.gmra.mxu0 %v350
    %v504 = vpop.f32.mrf.mxu0
    %v505 = vadd.f32 %v470, %v504
    %506 = vmatmul.f32.gmra.mxu0 %v348
    %v507 = vpop.f32.mrf.mxu0
    %v508 = vadd.f32 %v473, %v507
    %509 = vmatmul.f32.gmra.mxu0 %v350
    %v510 = vpop.f32.mrf.mxu0
    %v511 = vadd.f32 %v476, %v510
    %512 = vdwg.mxu0
    %v513 = vperm.slane %v73, 0
    %v514 = vadd.f32 %v496, %v513
    %v515 = vadd.f32 %v499, %v513
    %v516 = vadd.f32 %v502, %v513
    %v517 = vadd.f32 %v505, %v513
    %v518 = vadd.f32 %v508, %v513
    %v519 = vadd.f32 %v511, %v513
    %vm520 = vcmp.ge.f32.partialorder %v514, 0.0
    %vm521 = vcmp.ge.f32.partialorder %v515, 0.0
    %vm522 = vcmp.ge.f32.partialorder %v516, 0.0
    %vm523 = vcmp.ge.f32.partialorder %v517, 0.0
    %vm524 = vcmp.ge.f32.partialorder %v518, 0.0
    %vm525 = vcmp.ge.f32.partialorder %v519, 0.0
    %v526 = vmul.f32 %v514, 0.2
    %v527 = vmul.f32 %v515, 0.2
    %v528 = vmul.f32 %v516, 0.2
    %v529 = vmul.f32 %v517, 0.2
    %v530 = vmul.f32 %v518, 0.2
    %v531 = vmul.f32 %v519, 0.2
    %v532 = vsel %vm520, %v514, %v526
    %v533 = vsel %vm521, %v515, %v527
    %v534 = vsel %vm522, %v516, %v528
    %v535 = vsel %vm523, %v517, %v529
    %v536 = vsel %vm524, %v518, %v530
    %v537 = vsel %vm525, %v519, %v531
    %v538 = vperm.slane %v74, 0
    %v540 = vsel %vm320, %v532, 0
    %v543 = vsel %vm320, %v533, 0
    %v546 = vsel %vm320, %v534, 0
    %v549 = vsel %vm320, %v535, 0
    %v552 = vsel %vm320, %v536, 0
    %v555 = vsel %vm320, %v537, 0
    %557 = vmatpush.msra.mxu0 0.0
    %558 = vmatpush.msra.mxu0 0.0
    %559 = vmatpush.msra.mxu0 0.0
    %560 = vmatpush.msra.mxu0 0.0
    %561 = vmatpush.msra.mxu0 0.0
    %562 = vmatpush.msra.mxu0 0.0
    %563 = vmatpush.msra.mxu0 0.0
    %564 = vmatpush.msra.mxu0 0.0
    %565 = vmatpush.msra.mxu0 0.0
    %566 = vmatpush.msra.mxu0 0.0
    %567 = vmatpush.msra.mxu0 0.0
    %568 = vmatpush.msra.mxu0 0.0
    %569 = vmatpush.msra.mxu0 0.0
    %570 = vmatpush.msra.mxu0 0.0
    %571 = vmatpush.msra.mxu0 0.0
    %572 = vmatpush.msra.mxu0 %v79
    %573 = vmatmul.f32.gmra.mxu0 %v540
    %v574 = vpop.f32.mrf.mxu0
    %v575 = vadd.f32 %v538, %v574
    %576 = vmatmul.f32.gmra.mxu0 %v543
    %v577 = vpop.f32.mrf.mxu0
    %v578 = vadd.f32 %v538, %v577
    %579 = vmatmul.f32.gmra.mxu0 %v546
    %v580 = vpop.f32.mrf.mxu0
    %v581 = vadd.f32 %v538, %v580
    %582 = vmatmul.f32.gmra.mxu0 %v549
    %v583 = vpop.f32.mrf.mxu0
    %v584 = vadd.f32 %v538, %v583
    %585 = vmatmul.f32.gmra.mxu0 %v552
    %v586 = vpop.f32.mrf.mxu0
    %v587 = vadd.f32 %v538, %v586
    %588 = vmatmul.f32.gmra.mxu0 %v555
    %v589 = vpop.f32.mrf.mxu0
    %v590 = vadd.f32 %v538, %v589
    %591 = vdwg.mxu0
    %593 = vset.pattern.permute.xlu0 0
    %594 = vperm.xlu0 %593, %v442
    %v595 = vpop.permute.xlu0 %594
    %v597 = vmul.f32 %v595, %v575
    %598 = vset.pattern.permute.xlu0 1
    %599 = vperm.xlu0 %598, %v442
    %v600 = vpop.permute.xlu0 %599
    %v602 = vmul.f32 %v600, %v578
    %604 = vrot.lane.b32.xlu0 %v602, 8
    %v605 = vpop.permute.xlu0 %604
    %v607 = vsel %vm320, %v597, %v605
    %608 = vst.msk [vmem:[#allocation3] sm:$0x1] %vm117, 0.0
    %609 = vst.msk [vmem:[#allocation3 + $0x1] sm:$0x1] %vm117, 0.0
    %610 = vst.msk [vmem:[#allocation3 + $0x2] sm:$0x1] %vm117, 0.0
    %611 = vst.msk [vmem:[#allocation3 + $0x3] sm:$0x1] %vm117, 0.0
    %612 = vst.msk [vmem:[#allocation3 + $0x4] sm:$0x1] %vm117, 0.0
    %613 = vst.msk [vmem:[#allocation3 + $0x5] sm:$0x1] %vm117, 0.0
    %614 = vst.msk [vmem:[#allocation3 + $0x6] sm:$0x1] %vm117, 0.0
    %615 = vst.msk [vmem:[#allocation3 + $0x7] sm:$0x1] %vm117, 0.0
    %616 = vst.msk [vmem:[#allocation3 + $0x8] sm:$0x1] %vm117, 0.0
    %617 = vst.msk [vmem:[#allocation3 + $0x9] sm:$0x1] %vm117, 0.0
    %618 = vst.msk [vmem:[#allocation3 + $0xa] sm:$0x1] %vm117, 0.0
    %619 = vst.msk [vmem:[#allocation3 + $0xb] sm:$0x1] %vm117, 0.0
    %s620 = sld [smem:[#allocation5]]
    %s621 = scalar_lea.vmem [#allocation3], %s620
    %v622 = vld [vmem:[%s621] sm:$0x1]
    %v623 = vadd.f32 %v622, %v607
    %624 = vst.msk [vmem:[%s621] sm:$0x1] %vm117, %v623
    %s625 = sld [smem:[#allocation5 + $0x1]]
    %s626 = scalar_lea.vmem [#allocation3], %s625
    %v627 = vld [vmem:[%s626] sm:$0x1]
    %629 = vst [vmem:[#allocation1] sm:$0xff] %v607
    %s630 = scalar_lea.vmem [#allocation1], 1
    %v631 = vld [vmem:[%s630] ss:$9 sm:$0xff]
    %v633 = vadd.f32 %v627, %v631
    %634 = vst.msk [vmem:[%s626] sm:$0x1] %vm117, %v633
    %s635 = sld [smem:[#allocation5 + $0x2]]
    %s636 = scalar_lea.vmem [#allocation3], %s635
    %v637 = vld [vmem:[%s636] sm:$0x1]
    %638 = vst [vmem:[#allocation1] sm:$0xff] %v607
    %s639 = scalar_lea.vmem [#allocation1], 2
    %v640 = vld [vmem:[%s639] ss:$9 sm:$0xff]
    %v642 = vadd.f32 %v637, %v640
    %643 = vst.msk [vmem:[%s636] sm:$0x1] %vm117, %v642
    %s644 = sld [smem:[#allocation5 + $0x3]]
    %s645 = scalar_lea.vmem [#allocation3], %s644
    %v646 = vld [vmem:[%s645] sm:$0x1]
    %647 = vst [vmem:[#allocation1] sm:$0xff] %v607
    %s648 = scalar_lea.vmem [#allocation1], 3
    %v649 = vld [vmem:[%s648] ss:$9 sm:$0xff]
    %v651 = vadd.f32 %v646, %v649
    %652 = vst.msk [vmem:[%s645] sm:$0x1] %vm117, %v651
    %s653 = sld [smem:[#allocation5 + $0x4]]
    %s654 = scalar_lea.vmem [#allocation3], %s653
    %v655 = vld [vmem:[%s654] sm:$0x1]
    %656 = vst [vmem:[#allocation1] sm:$0xff] %v607
    %s657 = scalar_lea.vmem [#allocation1], 4
    %v658 = vld [vmem:[%s657] ss:$9 sm:$0xff]
    %v660 = vadd.f32 %v655, %v658
    %661 = vst.msk [vmem:[%s654] sm:$0x1] %vm117, %v660
    %s662 = sld [smem:[#allocation5 + $0x5]]
    %s663 = scalar_lea.vmem [#allocation3], %s662
    %v664 = vld [vmem:[%s663] sm:$0x1]
    %665 = vst [vmem:[#allocation1] sm:$0xff] %v607
    %s666 = scalar_lea.vmem [#allocation1], 5
    %v667 = vld [vmem:[%s666] ss:$9 sm:$0xff]
    %v669 = vadd.f32 %v664, %v667
    %670 = vst.msk [vmem:[%s663] sm:$0x1] %vm117, %v669
    %s671 = sld [smem:[#allocation5 + $0x6]]
    %s672 = scalar_lea.vmem [#allocation3], %s671
    %v673 = vld [vmem:[%s672] sm:$0x1]
    %674 = vst [vmem:[#allocation1] sm:$0xff] %v607
    %s675 = scalar_lea.vmem [#allocation1], 6
    %v676 = vld [vmem:[%s675] ss:$9 sm:$0xff]
    %v678 = vadd.f32 %v673, %v676
    %679 = vst.msk [vmem:[%s672] sm:$0x1] %vm117, %v678
    %s680 = sld [smem:[#allocation5 + $0x7]]
    %s681 = scalar_lea.vmem [#allocation3], %s680
    %v682 = vld [vmem:[%s681] sm:$0x1]
    %683 = vst [vmem:[#allocation1] sm:$0xff] %v607
    %s684 = scalar_lea.vmem [#allocation1], 7
    %v685 = vld [vmem:[%s684] ss:$9 sm:$0xff]
    %v687 = vadd.f32 %v682, %v685
    %688 = vst.msk [vmem:[%s681] sm:$0x1] %vm117, %v687
    %v689 = vld [vmem:[#allocation3] sm:$0x1]
    %s690 = scalar_lea.vmem [#allocation3], 1
    %v691 = vld [vmem:[%s690] sm:$0x1]
    %s692 = scalar_lea.vmem [#allocation3], 2
    %v693 = vld [vmem:[%s692] sm:$0x1]
    %s694 = scalar_lea.vmem [#allocation3], 3
    %v695 = vld [vmem:[%s694] sm:$0x1]
    %s696 = scalar_lea.vmem [#allocation3], 4
    %v697 = vld [vmem:[%s696] sm:$0x1]
    %s698 = scalar_lea.vmem [#allocation3], 5
    %v699 = vld [vmem:[%s698] sm:$0x1]
    %s700 = scalar_lea.vmem [#allocation3], 6
    %v701 = vld [vmem:[%s700] sm:$0x1]
    %s702 = scalar_lea.vmem [#allocation3], 7
    %v703 = vld [vmem:[%s702] sm:$0x1]
    %s704 = scalar_lea.vmem [#allocation3], 8
    %v705 = vld [vmem:[%s704] sm:$0x1]
    %s706 = scalar_lea.vmem [#allocation3], 9
    %v707 = vld [vmem:[%s706] sm:$0x1]
    %s708 = scalar_lea.vmem [#allocation3], 10
    %v709 = vld [vmem:[%s708] sm:$0x1]
    %s710 = scalar_lea.vmem [#allocation3], 11
    %v711 = vld [vmem:[%s710] sm:$0x1]
    %v713 = vperm.slane %v691, 0
    %v716 = vperm.slane %v693, 0
    %v719 = vperm.slane %v695, 0
    %v722 = vperm.slane %v697, 0
    %v725 = vperm.slane %v699, 0
    %v728 = vperm.slane %v701, 0
    %v731 = vperm.slane %v703, 0
    %v734 = vperm.slane %v707, 0
    %v737 = vperm.slane %v709, 0
    %v740 = vperm.slane %v711, 0
    %v742 = vsel %vm193, %v689, %v713
    %v743 = vsel %vm195, %v742, %v716
    %v744 = vsel %vm197, %v743, %v719
    %v745 = vsel %vm199, %v744, %v722
    %v746 = vsel %vm201, %v745, %v725
    %v747 = vsel %vm203, %v746, %v728
    %v748 = vsel %vm205, %v747, %v731
    %v749 = vsel %vm193, %v705, %v734
    %v750 = vsel %vm195, %v749, %v737
    %v751 = vsel %vm197, %v750, %v740
    %v752 = vperm.slane %v75, 0
    %v753 = vmul.f32 %v752, %v112
    %v754 = vmul.f32 %v752, %v115
    %v755 = vadd.f32 %v753, %v748
    %v756 = vadd.f32 %v754, %v751
    %v757 = vperm.slane %v76, 0
    %v758 = vadd.f32 %v755, %v757
    %v759 = vadd.f32 %v756, %v757
    %v760 = vsub.f32 0.0, %v758
    %v761 = vsub.f32 0.0, %v759
    %v762 = vmul.f32 %v760, 1.442695
    %v763 = vpow.pop %v762
    %v764 = vmul.f32 %v761, 1.442695
    %v765 = vpow.pop %v764
    %v766 = vadd.f32 %v763, 1.0
    %v767 = vadd.f32 %v765, 1.0
    %v768 = vrcp.pop %v766
    %v769 = vrcp.pop %v767
    %770 = vst.msk [vmem:[%s4] sm:$0xff] %vm87, %v768
    %vm771 = vcmask 125952
    %772 = vst.msk [vmem:[%s4 + $0x8] sm:$0xf] %vm771, %v769
    %v773 = vmul.f32 %v595, %v581
    %v774 = vmul.f32 %v600, %v584
    %776 = vrot.lane.b32.xlu0 %v774, 8
    %v777 = vpop.permute.xlu0 %776
    %v779 = vsel %vm320, %v773, %v777
    %780 = vst.msk [vmem:[#allocation3] sm:$0x1] %vm117, 0.0
    %781 = vst.msk [vmem:[#allocation3 + $0x1] sm:$0x1] %vm117, 0.0
    %782 = vst.msk [vmem:[#allocation3 + $0x2] sm:$0x1] %vm117, 0.0
    %783 = vst.msk [vmem:[#allocation3 + $0x3] sm:$0x1] %vm117, 0.0
    %784 = vst.msk [vmem:[#allocation3 + $0x4] sm:$0x1] %vm117, 0.0
    %785 = vst.msk [vmem:[#allocation3 + $0x5] sm:$0x1] %vm117, 0.0
    %786 = vst.msk [vmem:[#allocation3 + $0x6] sm:$0x1] %vm117, 0.0
    %787 = vst.msk [vmem:[#allocation3 + $0x7] sm:$0x1] %vm117, 0.0
    %788 = vst.msk [vmem:[#allocation3 + $0x8] sm:$0x1] %vm117, 0.0
    %789 = vst.msk [vmem:[#allocation3 + $0x9] sm:$0x1] %vm117, 0.0
    %790 = vst.msk [vmem:[#allocation3 + $0xa] sm:$0x1] %vm117, 0.0
    %791 = vst.msk [vmem:[#allocation3 + $0xb] sm:$0x1] %vm117, 0.0
    %s792 = sld [smem:[#allocation5 + $0x80]]
    %s793 = scalar_lea.vmem [#allocation3], %s792
    %v794 = vld [vmem:[%s793] sm:$0x1]
    %v795 = vadd.f32 %v794, %v779
    %796 = vst.msk [vmem:[%s793] sm:$0x1] %vm117, %v795
    %s797 = sld [smem:[#allocation5 + $0x81]]
    %s798 = scalar_lea.vmem [#allocation3], %s797
    %v799 = vld [vmem:[%s798] sm:$0x1]
    %801 = vst [vmem:[#allocation1] sm:$0xff] %v779
    %s802 = scalar_lea.vmem [#allocation1], 1
    %v803 = vld [vmem:[%s802] ss:$9 sm:$0xff]
    %v805 = vadd.f32 %v799, %v803
    %806 = vst.msk [vmem:[%s798] sm:$0x1] %vm117, %v805
    %s807 = sld [smem:[#allocation5 + $0x82]]
    %s808 = scalar_lea.vmem [#allocation3], %s807
    %v809 = vld [vmem:[%s808] sm:$0x1]
    %810 = vst [vmem:[#allocation1] sm:$0xff] %v779
    %s811 = scalar_lea.vmem [#allocation1], 2
    %v812 = vld [vmem:[%s811] ss:$9 sm:$0xff]
    %v814 = vadd.f32 %v809, %v812
    %815 = vst.msk [vmem:[%s808] sm:$0x1] %vm117, %v814
    %s816 = sld [smem:[#allocation5 + $0x83]]
    %s817 = scalar_lea.vmem [#allocation3], %s816
    %v818 = vld [vmem:[%s817] sm:$0x1]
    %819 = vst [vmem:[#allocation1] sm:$0xff] %v779
    %s820 = scalar_lea.vmem [#allocation1], 3
    %v821 = vld [vmem:[%s820] ss:$9 sm:$0xff]
    %v823 = vadd.f32 %v818, %v821
    %824 = vst.msk [vmem:[%s817] sm:$0x1] %vm117, %v823
    %s825 = sld [smem:[#allocation5 + $0x84]]
    %s826 = scalar_lea.vmem [#allocation3], %s825
    %v827 = vld [vmem:[%s826] sm:$0x1]
    %828 = vst [vmem:[#allocation1] sm:$0xff] %v779
    %s829 = scalar_lea.vmem [#allocation1], 4
    %v830 = vld [vmem:[%s829] ss:$9 sm:$0xff]
    %v832 = vadd.f32 %v827, %v830
    %833 = vst.msk [vmem:[%s826] sm:$0x1] %vm117, %v832
    %s834 = sld [smem:[#allocation5 + $0x85]]
    %s835 = scalar_lea.vmem [#allocation3], %s834
    %v836 = vld [vmem:[%s835] sm:$0x1]
    %837 = vst [vmem:[#allocation1] sm:$0xff] %v779
    %s838 = scalar_lea.vmem [#allocation1], 5
    %v839 = vld [vmem:[%s838] ss:$9 sm:$0xff]
    %v841 = vadd.f32 %v836, %v839
    %842 = vst.msk [vmem:[%s835] sm:$0x1] %vm117, %v841
    %s843 = sld [smem:[#allocation5 + $0x86]]
    %s844 = scalar_lea.vmem [#allocation3], %s843
    %v845 = vld [vmem:[%s844] sm:$0x1]
    %846 = vst [vmem:[#allocation1] sm:$0xff] %v779
    %s847 = scalar_lea.vmem [#allocation1], 6
    %v848 = vld [vmem:[%s847] ss:$9 sm:$0xff]
    %v850 = vadd.f32 %v845, %v848
    %851 = vst.msk [vmem:[%s844] sm:$0x1] %vm117, %v850
    %s852 = sld [smem:[#allocation5 + $0x87]]
    %s853 = scalar_lea.vmem [#allocation3], %s852
    %v854 = vld [vmem:[%s853] sm:$0x1]
    %855 = vst [vmem:[#allocation1] sm:$0xff] %v779
    %s856 = scalar_lea.vmem [#allocation1], 7
    %v857 = vld [vmem:[%s856] ss:$9 sm:$0xff]
    %v859 = vadd.f32 %v854, %v857
    %860 = vst.msk [vmem:[%s853] sm:$0x1] %vm117, %v859
    %v861 = vld [vmem:[#allocation3] sm:$0x1]
    %v862 = vld [vmem:[%s690] sm:$0x1]
    %v863 = vld [vmem:[%s692] sm:$0x1]
    %v864 = vld [vmem:[%s694] sm:$0x1]
    %v865 = vld [vmem:[%s696] sm:$0x1]
    %v866 = vld [vmem:[%s698] sm:$0x1]
    %v867 = vld [vmem:[%s700] sm:$0x1]
    %v868 = vld [vmem:[%s702] sm:$0x1]
    %v869 = vld [vmem:[%s704] sm:$0x1]
    %v870 = vld [vmem:[%s706] sm:$0x1]
    %v871 = vld [vmem:[%s708] sm:$0x1]
    %v872 = vld [vmem:[%s710] sm:$0x1]
    %v874 = vperm.slane %v862, 0
    %v877 = vperm.slane %v863, 0
    %v880 = vperm.slane %v864, 0
    %v883 = vperm.slane %v865, 0
    %v886 = vperm.slane %v866, 0
    %v889 = vperm.slane %v867, 0
    %v892 = vperm.slane %v868, 0
    %v895 = vperm.slane %v870, 0
    %v898 = vperm.slane %v871, 0
    %v901 = vperm.slane %v872, 0
    %v903 = vsel %vm193, %v861, %v874
    %v904 = vsel %vm195, %v903, %v877
    %v905 = vsel %vm197, %v904, %v880
    %v906 = vsel %vm199, %v905, %v883
    %v907 = vsel %vm201, %v906, %v886
    %v908 = vsel %vm203, %v907, %v889
    %v909 = vsel %vm205, %v908, %v892
    %v910 = vsel %vm193, %v869, %v895
    %v911 = vsel %vm195, %v910, %v898
    %v912 = vsel %vm197, %v911, %v901
    %v913 = vadd.f32 %v753, %v909
    %v914 = vadd.f32 %v754, %v912
    %v915 = vadd.f32 %v913, %v757
    %v916 = vadd.f32 %v914, %v757
    %v917 = vsub.f32 0.0, %v915
    %v918 = vsub.f32 0.0, %v916
    %v919 = vmul.f32 %v917, 1.442695
    %v920 = vpow.pop %v919
    %v921 = vmul.f32 %v918, 1.442695
    %v922 = vpow.pop %v921
    %v923 = vadd.f32 %v920, 1.0
    %v924 = vadd.f32 %v922, 1.0
    %v925 = vrcp.pop %v923
    %v926 = vrcp.pop %v924
    %927 = vst.msk [vmem:[%s4 + $0xc] sm:$0xff] %vm87, %v925
    %928 = vst.msk [vmem:[%s4 + $0x14] sm:$0xf] %vm771, %v926
    %v929 = vmul.f32 %v595, %v587
    %v930 = vmul.f32 %v600, %v590
    %932 = vrot.lane.b32.xlu0 %v930, 8
    %v933 = vpop.permute.xlu0 %932
    %v935 = vsel %vm320, %v929, %v933
    %936 = vst.msk [vmem:[#allocation3] sm:$0x1] %vm117, 0.0
    %937 = vst.msk [vmem:[#allocation3 + $0x1] sm:$0x1] %vm117, 0.0
    %938 = vst.msk [vmem:[#allocation3 + $0x2] sm:$0x1] %vm117, 0.0
    %939 = vst.msk [vmem:[#allocation3 + $0x3] sm:$0x1] %vm117, 0.0
    %940 = vst.msk [vmem:[#allocation3 + $0x4] sm:$0x1] %vm117, 0.0
    %941 = vst.msk [vmem:[#allocation3 + $0x5] sm:$0x1] %vm117, 0.0
    %942 = vst.msk [vmem:[#allocation3 + $0x6] sm:$0x1] %vm117, 0.0
    %943 = vst.msk [vmem:[#allocation3 + $0x7] sm:$0x1] %vm117, 0.0
    %944 = vst.msk [vmem:[#allocation3 + $0x8] sm:$0x1] %vm117, 0.0
    %945 = vst.msk [vmem:[#allocation3 + $0x9] sm:$0x1] %vm117, 0.0
    %946 = vst.msk [vmem:[#allocation3 + $0xa] sm:$0x1] %vm117, 0.0
    %947 = vst.msk [vmem:[#allocation3 + $0xb] sm:$0x1] %vm117, 0.0
    %s948 = sld [smem:[#allocation5 + $0x100]]
    %s949 = scalar_lea.vmem [#allocation3], %s948
    %v950 = vld [vmem:[%s949] sm:$0x1]
    %v951 = vadd.f32 %v950, %v935
    %952 = vst.msk [vmem:[%s949] sm:$0x1] %vm117, %v951
    %s953 = sld [smem:[#allocation5 + $0x101]]
    %s954 = scalar_lea.vmem [#allocation3], %s953
    %v955 = vld [vmem:[%s954] sm:$0x1]
    %957 = vst [vmem:[#allocation1] sm:$0xff] %v935
    %s958 = scalar_lea.vmem [#allocation1], 1
    %v959 = vld [vmem:[%s958] ss:$9 sm:$0xff]
    %v961 = vadd.f32 %v955, %v959
    %962 = vst.msk [vmem:[%s954] sm:$0x1] %vm117, %v961
    %s963 = sld [smem:[#allocation5 + $0x102]]
    %s964 = scalar_lea.vmem [#allocation3], %s963
    %v965 = vld [vmem:[%s964] sm:$0x1]
    %966 = vst [vmem:[#allocation1] sm:$0xff] %v935
    %s967 = scalar_lea.vmem [#allocation1], 2
    %v968 = vld [vmem:[%s967] ss:$9 sm:$0xff]
    %v970 = vadd.f32 %v965, %v968
    %971 = vst.msk [vmem:[%s964] sm:$0x1] %vm117, %v970
    %s972 = sld [smem:[#allocation5 + $0x103]]
    %s973 = scalar_lea.vmem [#allocation3], %s972
    %v974 = vld [vmem:[%s973] sm:$0x1]
    %975 = vst [vmem:[#allocation1] sm:$0xff] %v935
    %s976 = scalar_lea.vmem [#allocation1], 3
    %v977 = vld [vmem:[%s976] ss:$9 sm:$0xff]
    %v979 = vadd.f32 %v974, %v977
    %980 = vst.msk [vmem:[%s973] sm:$0x1] %vm117, %v979
    %s981 = sld [smem:[#allocation5 + $0x104]]
    %s982 = scalar_lea.vmem [#allocation3], %s981
    %v983 = vld [vmem:[%s982] sm:$0x1]
    %984 = vst [vmem:[#allocation1] sm:$0xff] %v935
    %s985 = scalar_lea.vmem [#allocation1], 4
    %v986 = vld [vmem:[%s985] ss:$9 sm:$0xff]
    %v988 = vadd.f32 %v983, %v986
    %989 = vst.msk [vmem:[%s982] sm:$0x1] %vm117, %v988
    %s990 = sld [smem:[#allocation5 + $0x105]]
    %s991 = scalar_lea.vmem [#allocation3], %s990
    %v992 = vld [vmem:[%s991] sm:$0x1]
    %993 = vst [vmem:[#allocation1] sm:$0xff] %v935
    %s994 = scalar_lea.vmem [#allocation1], 5
    %v995 = vld [vmem:[%s994] ss:$9 sm:$0xff]
    %v997 = vadd.f32 %v992, %v995
    %998 = vst.msk [vmem:[%s991] sm:$0x1] %vm117, %v997
    %s999 = sld [smem:[#allocation5 + $0x106]]
    %s1000 = scalar_lea.vmem [#allocation3], %s999
    %v1001 = vld [vmem:[%s1000] sm:$0x1]
    %1002 = vst [vmem:[#allocation1] sm:$0xff] %v935
    %s1003 = scalar_lea.vmem [#allocation1], 6
    %v1004 = vld [vmem:[%s1003] ss:$9 sm:$0xff]
    %v1006 = vadd.f32 %v1001, %v1004
    %1007 = vst.msk [vmem:[%s1000] sm:$0x1] %vm117, %v1006
    %s1008 = sld [smem:[#allocation5 + $0x107]]
    %s1009 = scalar_lea.vmem [#allocation3], %s1008
    %v1010 = vld [vmem:[%s1009] sm:$0x1]
    %1011 = vst [vmem:[#allocation1] sm:$0xff] %v935
    %s1012 = scalar_lea.vmem [#allocation1], 7
    %v1013 = vld [vmem:[%s1012] ss:$9 sm:$0xff]
    %v1015 = vadd.f32 %v1010, %v1013
    %1016 = vst.msk [vmem:[%s1009] sm:$0x1] %vm117, %v1015
    %v1017 = vld [vmem:[#allocation3] sm:$0x1]
    %v1018 = vld [vmem:[%s690] sm:$0x1]
    %v1019 = vld [vmem:[%s692] sm:$0x1]
    %v1020 = vld [vmem:[%s694] sm:$0x1]
    %v1021 = vld [vmem:[%s696] sm:$0x1]
    %v1022 = vld [vmem:[%s698] sm:$0x1]
    %v1023 = vld [vmem:[%s700] sm:$0x1]
    %v1024 = vld [vmem:[%s702] sm:$0x1]
    %v1025 = vld [vmem:[%s704] sm:$0x1]
    %v1026 = vld [vmem:[%s706] sm:$0x1]
    %v1027 = vld [vmem:[%s708] sm:$0x1]
    %v1028 = vld [vmem:[%s710] sm:$0x1]
    %v1030 = vperm.slane %v1018, 0
    %v1033 = vperm.slane %v1019, 0
    %v1036 = vperm.slane %v1020, 0
    %v1039 = vperm.slane %v1021, 0
    %v1042 = vperm.slane %v1022, 0
    %v1045 = vperm.slane %v1023, 0
    %v1048 = vperm.slane %v1024, 0
    %v1051 = vperm.slane %v1026, 0
    %v1054 = vperm.slane %v1027, 0
    %v1057 = vperm.slane %v1028, 0
    %v1059 = vsel %vm193, %v1017, %v1030
    %v1060 = vsel %vm195, %v1059, %v1033
    %v1061 = vsel %vm197, %v1060, %v1036
    %v1062 = vsel %vm199, %v1061, %v1039
    %v1063 = vsel %vm201, %v1062, %v1042
    %v1064 = vsel %vm203, %v1063, %v1045
    %v1065 = vsel %vm205, %v1064, %v1048
    %v1066 = vsel %vm193, %v1025, %v1051
    %v1067 = vsel %vm195, %v1066, %v1054
    %v1068 = vsel %vm197, %v1067, %v1057
    %v1069 = vadd.f32 %v753, %v1065
    %v1070 = vadd.f32 %v754, %v1068
    %v1071 = vadd.f32 %v1069, %v757
    %v1072 = vadd.f32 %v1070, %v757
    %v1073 = vsub.f32 0.0, %v1071
    %v1074 = vsub.f32 0.0, %v1072
    %v1075 = vmul.f32 %v1073, 1.442695
    %v1076 = vpow.pop %v1075
    %v1077 = vmul.f32 %v1074, 1.442695
    %v1078 = vpow.pop %v1077
    %v1079 = vadd.f32 %v1076, 1.0
    %v1080 = vadd.f32 %v1078, 1.0
    %v1081 = vrcp.pop %v1079
    %v1082 = vrcp.pop %v1080
    %1083 = vst.msk [vmem:[%s4 + $0x18] sm:$0xff] %vm87, %v1081
    %1084 = vst.msk [vmem:[%s4 + $0x20] sm:$0xf] %vm771, %v1082
    // Predicated region
    $region26: #{tpu_custom_call.1} parent=1 // pred_check
      _
    $region27: #{tpu_custom_call.1} parent=1 // pred_check_branch
      %1086 = sbr.rel (0) target = $region29
    $region28: #{tpu_custom_call.1} parent=1 // pred_region
      _
    $region29: #{tpu_custom_call.1} parent=1 // pred_fallthru
      _
    // Predicated region
    $region30: #{tpu_custom_call.1} parent=1 // pred_check
      _
    $region31: #{tpu_custom_call.1} parent=1 // pred_check_branch
      %1088 = sbr.rel (0) target = $region33
    $region32: #{tpu_custom_call.1} parent=1 // pred_region
      _
    $region33: #{tpu_custom_call.1} parent=1 // pred_fallthru
      _
    %1089 = vsyncpa [#allocation7], 1
    %1090 = vsyncpa [#allocation9], 1

</llo_original>
